<compile_context>
chip_gen: v7x
topology: tpu7x:2x2x1
jax: 0.10.0
libtpu: 0.0.40
codegen_flags: <defaults>
</compile_context>

<pallas_src>
import functools

import jax
import jax.numpy as jnp
from jax import lax
from jax.experimental import pallas as pl
from jax.experimental.pallas import tpu as pltpu


def _mish(x):
    # Kernel-only cheap Mish: mish(x) = x * tanh(softplus(x)).
    # With u = exp(x):  tanh(log(1+u)) = (u^2 + 2u) / (u^2 + 2u + 2).
    # Clamp above 20 (mish(x) ~= x there, and exp would overflow f32); the division
    # uses the EUP approximate reciprocal so it stays off the VALU critical path.
    xc = jnp.minimum(x, 20.0)
    u = jnp.exp(xc)
    n = u * (u + 2.0)
    y = x * n * pl.reciprocal(n + 2.0, approx=True)
    return jnp.where(x > 20.0, x, y)


def bnet_fused_kernel(x_ref, cw_ref, cb_ref, bbb_ref, b1_ref, b2_ref,
                      wbb_hbm, w1_hbm, w2_hbm,
                      o_ref,
                      wbb_buf, w1_buf, w2_buf, sem):
    # x_ref   : (B*C, T)      f32   — batch folded onto sublanes
    # cw_ref  : (NV, C)       f32   — BHead conv11 weight (kernel_size=1)
    # cb_ref  : (NV, 1)       f32   — BHead conv11 bias
    # bbb/b1/b2 : (1, n_fc1/n_fc2/N_PAD) f32 biases
    # wbb/w1/w2_hbm : bf16 weights left in HBM (pl.ANY); DMA'd manually below
    # o_ref   : (M_PAD, N_PAD) f32  — sublane/lane padded; wrapper slices
    NV, C = cw_ref.shape
    BC, T = x_ref.shape
    B = BC // C
    M_PAD = o_ref.shape[0]

    # Kick off the big weight DMAs immediately so they overlap the VPU-only
    # z-norm / conv / pooling stage below (w1 alone is 512 KiB).
    cp_wbb = pltpu.make_async_copy(wbb_hbm, wbb_buf, sem.at[0])
    cp_w1 = pltpu.make_async_copy(w1_hbm, w1_buf, sem.at[1])
    cp_w2 = pltpu.make_async_copy(w2_hbm, w2_buf, sem.at[2])
    cp_wbb.start()
    cp_w1.start()
    cp_w2.start()

    # ---- BNet._znorm_along_the_last_dim (torch.std default => unbiased, ddof=1).
    # eps=1e-12 (absent in the torch reference) only changes constant channels
    # (finite vs inf/NaN) — intentional.
    x = x_ref[...]
    mean = jnp.mean(x, axis=-1, keepdims=True)
    d = x - mean
    var = jnp.sum(d * d, axis=-1, keepdims=True) * (1.0 / (T - 1))
    xn = d * lax.rsqrt(var + 1e-12)

    # TODO(synk): SwapChannels / DropoutChannels / FreqGainChanger /
    # ChannelGainChanger / SpatialAttention are train-time augmentation layers
    # (identity at inference) or have no provided source; skipped here.

    # ---- BHead.conv11 (1x1 conv, K=C=4 is too small for the MXU) as a VPU
    # broadcast-MAC per batch, fused with the stand-in backbone pooling.
    # B, C are small trace-time constants; for production batch sizes switch to a
    # vectorized / fori_loop form over a VMEM-resident xn to bound vreg live ranges.
    cw = cw_ref[...]
    cb = cb_ref[...]
    inv_t = 1.0 / T
    lane = lax.broadcasted_iota(jnp.int32, (NV, M_PAD), 1)
    featT = jnp.zeros((NV, M_PAD), jnp.float32)     # feat^T: batch on lanes
    for b in range(B):
        acc = cw[:, 0:1] * xn[b * C:b * C + 1, :]
        for c in range(1, C):
            acc = acc + cw[:, c:c + 1] * xn[b * C + c:b * C + c + 1, :]
        h = acc + cb                                 # (NV, T) BHead output, VMEM-resident
        # TODO(synk): MNet_1000.forward_bb source unavailable; stand-in backbone
        # = ReLU -> global average pool over time -> Linear(NV, n_fc1). The ReLU
        # keeps the result dependent on x (plain mean-pool of a z-normed signal
        # collapses to the conv bias, per review).
        g = jnp.maximum(h, 0.0)                      # VPU only, no EUP cost
        col = jnp.sum(g, axis=-1, keepdims=True) * inv_t   # (NV, 1)
        featT = featT + jnp.where(lane == b, col, 0.0)

    # ---- backbone projection + fcs[i_head]: Mish -> Linear -> Mish -> Linear
    # (Dropout layers are identity at inference). bf16 weights on the MXU with f32
    # accumulation; elementwise math stays f32 (v5e VPU/EUP have no bf16 path).
    cp_wbb.wait()
    # featT is (NV, M_PAD): contracting dim 0 costs one tiny (32 x M_PAD) XLU
    # transpose — unavoidable while the conv output lives in (NV, T) layout.
    z = lax.dot_general(
        featT.astype(jnp.bfloat16), wbb_buf[...],
        dimension_numbers=(((0,), (0,)), ((), ())),
        preferred_element_type=jnp.float32) + bbb_ref[...]
    z = _mish(z)
    cp_w1.wait()
    z = jnp.dot(z.astype(jnp.bfloat16), w1_buf[...],
                preferred_element_type=jnp.float32) + b1_ref[...]
    z = _mish(z)
    cp_w2.wait()
    z = jnp.dot(z.astype(jnp.bfloat16), w2_buf[...],
                preferred_element_type=jnp.float32) + b2_ref[...]
    o_ref[...] = z                                   # lane-dense, unmasked store


def prepare_params(params):
    """One-time, model-load weight preparation (kept OUT of the per-call path):
    lane-pad the classifier weight/bias to a 128 multiple and cast the matmul
    weights to bf16 (half the DMA bytes, native MXU path)."""
    conv_w, conv_b, wbb, bbb, w1, b1, w2, b2 = params
    n_fc2, n_classes = w2.shape
    n_pad = ((n_classes + 127) // 128) * 128
    w2p = jnp.pad(w2, ((0, 0), (0, n_pad - n_classes)))
    b2p = jnp.pad(b2, ((0, 0), (0, n_pad - n_classes)))
    prepped = (
        jnp.asarray(conv_w, jnp.float32),
        jnp.asarray(conv_b, jnp.float32),
        jnp.asarray(bbb, jnp.float32),
        jnp.asarray(b1, jnp.float32),
        jnp.asarray(b2p, jnp.float32),
        wbb.astype(jnp.bfloat16),
        w1.astype(jnp.bfloat16),
        w2p.astype(jnp.bfloat16),
    )
    return prepped, n_classes


@functools.partial(jax.jit, static_argnames=("n_classes",))
def bnet_forward(x, prepped, *, n_classes):
    """BNet.forward(x, i_head) for a single head, inference mode."""
    conv_w, conv_b, bbb, b1, b2p, wbb_bf, w1_bf, w2_bf = prepped
    B, C, T = x.shape
    NV, n_fc1 = wbb_bf.shape
    n_fc2, n_pad = w2_bf.shape
    m_pad = max(8, ((B + 7) // 8) * 8)               # fill the sublane dim

    x2 = x.reshape(B * C, T).astype(jnp.float32)     # fold batch into sublanes (free)

    flops = 2 * (B * NV * C * T + m_pad * NV * n_fc1
                 + m_pad * n_fc1 * n_fc2 + m_pad * n_fc2 * n_pad)
    transcendentals = m_pad * (n_fc1 + n_fc2)        # one exp per Mish element
    bytes_accessed = (x2.size * 4 + conv_w.size * 4 + conv_b.size * 4
                      + bbb.size * 4 + b1.size * 4 + b2p.size * 4
                      + (wbb_bf.size + w1_bf.size + w2_bf.size) * 2
                      + m_pad * n_pad * 4)

    vmem = lambda: pl.BlockSpec(memory_space=pltpu.MemorySpace.VMEM)
    hbm = lambda: pl.BlockSpec(memory_space=pl.ANY)
    out = pl.pallas_call(
        bnet_fused_kernel,
        out_shape=jax.ShapeDtypeStruct((m_pad, n_pad), jnp.float32),
        in_specs=[vmem(), vmem(), vmem(), vmem(), vmem(), vmem(),
                  hbm(), hbm(), hbm()],
        out_specs=vmem(),
        scratch_shapes=[
            pltpu.VMEM((NV, n_fc1), jnp.bfloat16),     # wbb landing buffer
            pltpu.VMEM((n_fc1, n_fc2), jnp.bfloat16),  # w1 landing buffer (512 KiB)
            pltpu.VMEM((n_fc2, n_pad), jnp.bfloat16),  # w2 landing buffer
            pltpu.SemaphoreType.DMA((3,)),
        ],
        cost_estimate=pl.CostEstimate(
            flops=flops, transcendentals=transcendentals,
            bytes_accessed=bytes_accessed),
    )(x2, conv_w, conv_b, bbb, b1, b2p, wbb_bf, w1_bf, w2_bf)
    return out[:B, :n_classes]


if __name__ == "__main__":
    # BNet_config-ish small shapes: one head with n_chs=4, n_classes=3.
    B, C, T = 2, 4, 256
    NV = 32                                   # N_VIRTUAL_CHS
    n_fc1, n_fc2, n_classes = 1024, 256, 3    # BNet_config n_fc1 / n_fc2

    key = jax.random.PRNGKey(0)
    kx, k0, k1, k2, k3, k4, k5, k6, k7 = jax.random.split(key, 9)
    x = jax.random.normal(kx, (B, C, T), dtype=jnp.float32)

    conv_w = 0.10 * jax.random.normal(k0, (NV, C), dtype=jnp.float32)
    conv_b = 0.01 * jax.random.normal(k1, (NV, 1), dtype=jnp.float32)
    wbb    = 0.05 * jax.random.normal(k2, (NV, n_fc1), dtype=jnp.float32)
    bbb    = 0.01 * jax.random.normal(k3, (1, n_fc1), dtype=jnp.float32)
    w1     = 0.05 * jax.random.normal(k4, (n_fc1, n_fc2), dtype=jnp.float32)
    b1     = 0.01 * jax.random.normal(k5, (1, n_fc2), dtype=jnp.float32)
    w2     = 0.05 * jax.random.normal(k6, (n_fc2, n_classes), dtype=jnp.float32)
    b2     = 0.01 * jax.random.normal(k7, (1, n_classes), dtype=jnp.float32)

    params = (conv_w, conv_b, wbb, bbb, w1, b1, w2, b2)
    prepped, nc = prepare_params(params)       # model-load time, not per call

    out = bnet_forward(x, prepped, n_classes=nc)
    jax.block_until_ready(out)
    assert out.shape == (B, n_classes) and out.dtype == jnp.float32

    # Full-f32 reference of the same forward (module semantics + same backbone
    # stand-in, exact Mish) — validates z-norm, conv, pooling and the MLP chain.
    def ref_forward(x, params):
        cw, cb, wbb, bbb, w1, b1, w2, b2 = params
        mean = jnp.mean(x, axis=-1, keepdims=True)
        std = jnp.std(x, axis=-1, keepdims=True, ddof=1)
        xn = (x - mean) / std
        h = jnp.einsum('vc,bct->bvt', cw, xn) + cb[None, :, :]     # BHead conv11
        feat = jnp.mean(jnp.maximum(h, 0.0), axis=-1)              # backbone stand-in
        mish = lambda v: v * jnp.tanh(jax.nn.softplus(v))
        z = mish(feat @ wbb + bbb)
        z = mish(z @ w1 + b1)
        return z @ w2 + b2

    ref = ref_forward(x, params)
    assert jnp.allclose(out, ref, rtol=5e-2, atol=1e-2), (out, ref)
    print("KERNEL_OK")
</pallas_src>

<mosaic_0001>
module attributes {stable_mosaic.version = 11 : i64} {
  func.func @bnet_fused_kernel(%arg0: memref<8x256xf32, #tpu.memory_space<vmem>>, %arg1: memref<32x4xf32, #tpu.memory_space<vmem>>, %arg2: memref<32x1xf32, #tpu.memory_space<vmem>>, %arg3: memref<1x1024xf32, #tpu.memory_space<vmem>>, %arg4: memref<1x256xf32, #tpu.memory_space<vmem>>, %arg5: memref<1x128xf32, #tpu.memory_space<vmem>>, %arg6: memref<32x1024xbf16, #tpu.memory_space<any>>, %arg7: memref<1024x256xbf16, #tpu.memory_space<any>>, %arg8: memref<256x128xbf16, #tpu.memory_space<any>>, %arg9: memref<8x128xf32, #tpu.memory_space<vmem>>, %arg10: memref<32x1024xbf16, #tpu.memory_space<vmem>>, %arg11: memref<1024x256xbf16, #tpu.memory_space<vmem>>, %arg12: memref<256x128xbf16, #tpu.memory_space<vmem>>, %arg13: memref<3x!tpu.dma_semaphore, #tpu.memory_space<semaphore_mem>>) attributes {dimension_semantics = [], scalar_prefetch = 0 : i64, scratch_operands = 4 : i64, tpu.core_type = #tpu.core_type<tc>} {
    %c0_i32 = arith.constant 0 : i32
    %0 = tpu.memref_slice %arg13[%c0_i32] : memref<3x!tpu.dma_semaphore, #tpu.memory_space<semaphore_mem>> -> memref<1x!tpu.dma_semaphore, #tpu.memory_space<semaphore_mem>>
    %1 = tpu.memref_squeeze %0 : memref<1x!tpu.dma_semaphore, #tpu.memory_space<semaphore_mem>> -> memref<!tpu.dma_semaphore, #tpu.memory_space<semaphore_mem>>
    tpu.enqueue_dma source(%arg6 : memref<32x1024xbf16, #tpu.memory_space<any>>) target(%arg10 : memref<32x1024xbf16, #tpu.memory_space<vmem>>) target_semaphore(%1 : memref<!tpu.dma_semaphore, #tpu.memory_space<semaphore_mem>>)
    %c1_i32 = arith.constant 1 : i32
    %2 = tpu.memref_slice %arg13[%c1_i32] : memref<3x!tpu.dma_semaphore, #tpu.memory_space<semaphore_mem>> -> memref<1x!tpu.dma_semaphore, #tpu.memory_space<semaphore_mem>>
    %3 = tpu.memref_squeeze %2 : memref<1x!tpu.dma_semaphore, #tpu.memory_space<semaphore_mem>> -> memref<!tpu.dma_semaphore, #tpu.memory_space<semaphore_mem>>
    tpu.enqueue_dma source(%arg7 : memref<1024x256xbf16, #tpu.memory_space<any>>) target(%arg11 : memref<1024x256xbf16, #tpu.memory_space<vmem>>) target_semaphore(%3 : memref<!tpu.dma_semaphore, #tpu.memory_space<semaphore_mem>>)
    %c2_i32 = arith.constant 2 : i32
    %4 = tpu.memref_slice %arg13[%c2_i32] : memref<3x!tpu.dma_semaphore, #tpu.memory_space<semaphore_mem>> -> memref<1x!tpu.dma_semaphore, #tpu.memory_space<semaphore_mem>>
    %5 = tpu.memref_squeeze %4 : memref<1x!tpu.dma_semaphore, #tpu.memory_space<semaphore_mem>> -> memref<!tpu.dma_semaphore, #tpu.memory_space<semaphore_mem>>
    tpu.enqueue_dma source(%arg8 : memref<256x128xbf16, #tpu.memory_space<any>>) target(%arg12 : memref<256x128xbf16, #tpu.memory_space<vmem>>) target_semaphore(%5 : memref<!tpu.dma_semaphore, #tpu.memory_space<semaphore_mem>>)
    %c0 = arith.constant 0 : index
    %c0_0 = arith.constant 0 : index
    %6 = vector.load %arg0[%c0, %c0_0] : memref<8x256xf32, #tpu.memory_space<vmem>>, vector<8x256xf32>
    %cst = arith.constant dense<0.000000e+00> : vector<8xf32>
    %7 = vector.multi_reduction <add>, %6, %cst [1] : vector<8x256xf32> to vector<8xf32>
    %8 = vector.shape_cast %7 : vector<8xf32> to vector<8x1xf32>
    %cst_1 = arith.constant 2.560000e+02 : f32
    %9 = vector.broadcast %cst_1 : f32 to vector<8x1xf32>
    %10 = arith.divf %8, %9 : vector<8x1xf32>
    %11 = vector.broadcast %10 : vector<8x1xf32> to vector<8x256xf32>
    %12 = arith.subf %6, %11 : vector<8x256xf32>
    %13 = arith.mulf %12, %12 : vector<8x256xf32>
    %cst_2 = arith.constant dense<0.000000e+00> : vector<8xf32>
    %14 = vector.multi_reduction <add>, %13, %cst_2 [1] : vector<8x256xf32> to vector<8xf32>
    %15 = vector.shape_cast %14 : vector<8xf32> to vector<8x1xf32>
    %cst_3 = arith.constant 0.00392156886 : f32
    %16 = vector.broadcast %cst_3 : f32 to vector<8x1xf32>
    %17 = arith.mulf %15, %16 : vector<8x1xf32>
    %cst_4 = arith.constant 9.99999996E-13 : f32
    %18 = vector.broadcast %cst_4 : f32 to vector<8x1xf32>
    %19 = arith.addf %17, %18 : vector<8x1xf32>
    %20 = math.rsqrt %19 : vector<8x1xf32>
    %21 = vector.broadcast %20 : vector<8x1xf32> to vector<8x256xf32>
    %22 = arith.mulf %12, %21 : vector<8x256xf32>
    %c0_5 = arith.constant 0 : index
    %c0_6 = arith.constant 0 : index
    %23 = vector.load %arg1[%c0_5, %c0_6] : memref<32x4xf32, #tpu.memory_space<vmem>>, vector<32x4xf32>
    %c0_7 = arith.constant 0 : index
    %c0_8 = arith.constant 0 : index
    %24 = vector.load %arg2[%c0_7, %c0_8] : memref<32x1xf32, #tpu.memory_space<vmem>>, vector<32x1xf32>
    %25 = tpu.iota {dimensions = array<i32: 1>} : vector<32x8xi32>
    %cst_9 = arith.constant 0.000000e+00 : f32
    %26 = vector.broadcast %cst_9 : f32 to vector<32x8xf32>
    %27 = vector.extract_strided_slice %23 {offsets = [0, 0], sizes = [32, 1], strides = [1, 1]} : vector<32x4xf32> to vector<32x1xf32>
    %28 = vector.extract_strided_slice %22 {offsets = [0, 0], sizes = [1, 256], strides = [1, 1]} : vector<8x256xf32> to vector<1x256xf32>
    %29 = vector.broadcast %27 : vector<32x1xf32> to vector<32x256xf32>
    %30 = vector.broadcast %28 : vector<1x256xf32> to vector<32x256xf32>
    %31 = arith.mulf %29, %30 : vector<32x256xf32>
    %32 = vector.extract_strided_slice %23 {offsets = [0, 1], sizes = [32, 1], strides = [1, 1]} : vector<32x4xf32> to vector<32x1xf32>
    %33 = vector.extract_strided_slice %22 {offsets = [1, 0], sizes = [1, 256], strides = [1, 1]} : vector<8x256xf32> to vector<1x256xf32>
    %34 = vector.broadcast %32 : vector<32x1xf32> to vector<32x256xf32>
    %35 = vector.broadcast %33 : vector<1x256xf32> to vector<32x256xf32>
    %36 = arith.mulf %34, %35 : vector<32x256xf32>
    %37 = arith.addf %31, %36 : vector<32x256xf32>
    %38 = vector.extract_strided_slice %23 {offsets = [0, 2], sizes = [32, 1], strides = [1, 1]} : vector<32x4xf32> to vector<32x1xf32>
    %39 = vector.extract_strided_slice %22 {offsets = [2, 0], sizes = [1, 256], strides = [1, 1]} : vector<8x256xf32> to vector<1x256xf32>
    %40 = vector.broadcast %38 : vector<32x1xf32> to vector<32x256xf32>
    %41 = vector.broadcast %39 : vector<1x256xf32> to vector<32x256xf32>
    %42 = arith.mulf %40, %41 : vector<32x256xf32>
    %43 = arith.addf %37, %42 : vector<32x256xf32>
    %44 = vector.extract_strided_slice %23 {offsets = [0, 3], sizes = [32, 1], strides = [1, 1]} : vector<32x4xf32> to vector<32x1xf32>
    %45 = vector.extract_strided_slice %22 {offsets = [3, 0], sizes = [1, 256], strides = [1, 1]} : vector<8x256xf32> to vector<1x256xf32>
    %46 = vector.broadcast %44 : vector<32x1xf32> to vector<32x256xf32>
    %47 = vector.broadcast %45 : vector<1x256xf32> to vector<32x256xf32>
    %48 = arith.mulf %46, %47 : vector<32x256xf32>
    %49 = arith.addf %43, %48 : vector<32x256xf32>
    %50 = vector.broadcast %24 : vector<32x1xf32> to vector<32x256xf32>
    %51 = arith.addf %49, %50 : vector<32x256xf32>
    %cst_10 = arith.constant 0.000000e+00 : f32
    %52 = vector.broadcast %cst_10 : f32 to vector<32x256xf32>
    %53 = arith.maximumf %51, %52 : vector<32x256xf32>
    %cst_11 = arith.constant dense<0.000000e+00> : vector<32xf32>
    %54 = vector.multi_reduction <add>, %53, %cst_11 [1] : vector<32x256xf32> to vector<32xf32>
    %55 = vector.shape_cast %54 : vector<32xf32> to vector<32x1xf32>
    %cst_12 = arith.constant 3.906250e-03 : f32
    %56 = vector.broadcast %cst_12 : f32 to vector<32x1xf32>
    %57 = arith.mulf %55, %56 : vector<32x1xf32>
    %c0_i32_13 = arith.constant 0 : i32
    %58 = vector.broadcast %c0_i32_13 : i32 to vector<32x8xi32>
    %59 = arith.cmpi eq, %25, %58 : vector<32x8xi32>
    %cst_14 = arith.constant 0.000000e+00 : f32
    %60 = vector.shape_cast %57 : vector<32x1xf32> to vector<32x1xf32>
    %61 = vector.broadcast %60 : vector<32x1xf32> to vector<32x8xf32>
    %62 = vector.broadcast %cst_14 : f32 to vector<32x8xf32>
    %63 = arith.select %59, %61, %62 : vector<32x8xi1>, vector<32x8xf32>
    %64 = arith.addf %26, %63 : vector<32x8xf32>
    %65 = vector.extract_strided_slice %23 {offsets = [0, 0], sizes = [32, 1], strides = [1, 1]} : vector<32x4xf32> to vector<32x1xf32>
    %66 = vector.extract_strided_slice %22 {offsets = [4, 0], sizes = [1, 256], strides = [1, 1]} : vector<8x256xf32> to vector<1x256xf32>
    %67 = vector.broadcast %65 : vector<32x1xf32> to vector<32x256xf32>
    %68 = vector.broadcast %66 : vector<1x256xf32> to vector<32x256xf32>
    %69 = arith.mulf %67, %68 : vector<32x256xf32>
    %70 = vector.extract_strided_slice %23 {offsets = [0, 1], sizes = [32, 1], strides = [1, 1]} : vector<32x4xf32> to vector<32x1xf32>
    %71 = vector.extract_strided_slice %22 {offsets = [5, 0], sizes = [1, 256], strides = [1, 1]} : vector<8x256xf32> to vector<1x256xf32>
    %72 = vector.broadcast %70 : vector<32x1xf32> to vector<32x256xf32>
    %73 = vector.broadcast %71 : vector<1x256xf32> to vector<32x256xf32>
    %74 = arith.mulf %72, %73 : vector<32x256xf32>
    %75 = arith.addf %69, %74 : vector<32x256xf32>
    %76 = vector.extract_strided_slice %23 {offsets = [0, 2], sizes = [32, 1], strides = [1, 1]} : vector<32x4xf32> to vector<32x1xf32>
    %77 = vector.extract_strided_slice %22 {offsets = [6, 0], sizes = [1, 256], strides = [1, 1]} : vector<8x256xf32> to vector<1x256xf32>
    %78 = vector.broadcast %76 : vector<32x1xf32> to vector<32x256xf32>
    %79 = vector.broadcast %77 : vector<1x256xf32> to vector<32x256xf32>
    %80 = arith.mulf %78, %79 : vector<32x256xf32>
    %81 = arith.addf %75, %80 : vector<32x256xf32>
    %82 = vector.extract_strided_slice %23 {offsets = [0, 3], sizes = [32, 1], strides = [1, 1]} : vector<32x4xf32> to vector<32x1xf32>
    %83 = vector.extract_strided_slice %22 {offsets = [7, 0], sizes = [1, 256], strides = [1, 1]} : vector<8x256xf32> to vector<1x256xf32>
    %84 = vector.broadcast %82 : vector<32x1xf32> to vector<32x256xf32>
    %85 = vector.broadcast %83 : vector<1x256xf32> to vector<32x256xf32>
    %86 = arith.mulf %84, %85 : vector<32x256xf32>
    %87 = arith.addf %81, %86 : vector<32x256xf32>
    %88 = vector.broadcast %24 : vector<32x1xf32> to vector<32x256xf32>
    %89 = arith.addf %87, %88 : vector<32x256xf32>
    %cst_15 = arith.constant 0.000000e+00 : f32
    %90 = vector.broadcast %cst_15 : f32 to vector<32x256xf32>
    %91 = arith.maximumf %89, %90 : vector<32x256xf32>
    %cst_16 = arith.constant dense<0.000000e+00> : vector<32xf32>
    %92 = vector.multi_reduction <add>, %91, %cst_16 [1] : vector<32x256xf32> to vector<32xf32>
    %93 = vector.shape_cast %92 : vector<32xf32> to vector<32x1xf32>
    %cst_17 = arith.constant 3.906250e-03 : f32
    %94 = vector.broadcast %cst_17 : f32 to vector<32x1xf32>
    %95 = arith.mulf %93, %94 : vector<32x1xf32>
    %c1_i32_18 = arith.constant 1 : i32
    %96 = vector.broadcast %c1_i32_18 : i32 to vector<32x8xi32>
    %97 = arith.cmpi eq, %25, %96 : vector<32x8xi32>
    %cst_19 = arith.constant 0.000000e+00 : f32
    %98 = vector.shape_cast %95 : vector<32x1xf32> to vector<32x1xf32>
    %99 = vector.broadcast %98 : vector<32x1xf32> to vector<32x8xf32>
    %100 = vector.broadcast %cst_19 : f32 to vector<32x8xf32>
    %101 = arith.select %97, %99, %100 : vector<32x8xi1>, vector<32x8xf32>
    %102 = arith.addf %64, %101 : vector<32x8xf32>
    %c0_i32_20 = arith.constant 0 : i32
    %103 = tpu.memref_slice %arg13[%c0_i32_20] : memref<3x!tpu.dma_semaphore, #tpu.memory_space<semaphore_mem>> -> memref<1x!tpu.dma_semaphore, #tpu.memory_space<semaphore_mem>>
    %104 = tpu.memref_squeeze %103 : memref<1x!tpu.dma_semaphore, #tpu.memory_space<semaphore_mem>> -> memref<!tpu.dma_semaphore, #tpu.memory_space<semaphore_mem>>
    tpu.wait_dma2 semaphore(%104 : memref<!tpu.dma_semaphore, #tpu.memory_space<semaphore_mem>>) src(%arg6 : memref<32x1024xbf16, #tpu.memory_space<any>>) dst(%arg10 : memref<32x1024xbf16, #tpu.memory_space<vmem>>)
    %105 = arith.truncf %102 : vector<32x8xf32> to vector<32x8xbf16>
    %c0_21 = arith.constant 0 : index
    %c0_22 = arith.constant 0 : index
    %106 = vector.load %arg10[%c0_21, %c0_22] : memref<32x1024xbf16, #tpu.memory_space<vmem>>, vector<32x1024xbf16>
    %cst_23 = arith.constant dense<0.000000e+00> : vector<8x1024xf32>
    %107 = tpu.matmul %105, %106, %cst_23 {dimension_numbers = #tpu.dot_dimension_numbers<[0], [0], [1], [1], [0, 1, 1, 1], [], []>} : vector<32x8xbf16>, vector<32x1024xbf16>, vector<8x1024xf32> -> vector<8x1024xf32>
    %c0_24 = arith.constant 0 : index
    %c0_25 = arith.constant 0 : index
    %108 = vector.load %arg3[%c0_24, %c0_25] : memref<1x1024xf32, #tpu.memory_space<vmem>>, vector<1x1024xf32>
    %109 = vector.broadcast %108 : vector<1x1024xf32> to vector<8x1024xf32>
    %110 = arith.addf %107, %109 : vector<8x1024xf32>
    %cst_26 = arith.constant 2.000000e+01 : f32
    %111 = vector.broadcast %cst_26 : f32 to vector<8x1024xf32>
    %112 = arith.minimumf %110, %111 : vector<8x1024xf32>
    %113 = math.exp %112 : vector<8x1024xf32>
    %cst_27 = arith.constant 2.000000e+00 : f32
    %114 = vector.broadcast %cst_27 : f32 to vector<8x1024xf32>
    %115 = arith.addf %113, %114 : vector<8x1024xf32>
    %116 = arith.mulf %113, %115 : vector<8x1024xf32>
    %117 = arith.mulf %110, %116 : vector<8x1024xf32>
    %cst_28 = arith.constant 2.000000e+00 : f32
    %118 = vector.broadcast %cst_28 : f32 to vector<8x1024xf32>
    %119 = arith.addf %116, %118 : vector<8x1024xf32>
    %120 = tpu.reciprocal %119 {approx = true} : vector<8x1024xf32> -> vector<8x1024xf32>
    %121 = arith.mulf %117, %120 : vector<8x1024xf32>
    %cst_29 = arith.constant 2.000000e+01 : f32
    %122 = vector.broadcast %cst_29 : f32 to vector<8x1024xf32>
    %123 = arith.cmpf ogt, %110, %122 : vector<8x1024xf32>
    %124 = arith.select %123, %110, %121 : vector<8x1024xi1>, vector<8x1024xf32>
    %c1_i32_30 = arith.constant 1 : i32
    %125 = tpu.memref_slice %arg13[%c1_i32_30] : memref<3x!tpu.dma_semaphore, #tpu.memory_space<semaphore_mem>> -> memref<1x!tpu.dma_semaphore, #tpu.memory_space<semaphore_mem>>
    %126 = tpu.memref_squeeze %125 : memref<1x!tpu.dma_semaphore, #tpu.memory_space<semaphore_mem>> -> memref<!tpu.dma_semaphore, #tpu.memory_space<semaphore_mem>>
    tpu.wait_dma2 semaphore(%126 : memref<!tpu.dma_semaphore, #tpu.memory_space<semaphore_mem>>) src(%arg7 : memref<1024x256xbf16, #tpu.memory_space<any>>) dst(%arg11 : memref<1024x256xbf16, #tpu.memory_space<vmem>>)
    %127 = arith.truncf %124 : vector<8x1024xf32> to vector<8x1024xbf16>
    %c0_31 = arith.constant 0 : index
    %c0_32 = arith.constant 0 : index
    %128 = vector.load %arg11[%c0_31, %c0_32] : memref<1024x256xbf16, #tpu.memory_space<vmem>>, vector<1024x256xbf16>
    %cst_33 = arith.constant dense<0.000000e+00> : vector<8x256xf32>
    %129 = tpu.matmul %127, %128, %cst_33 {dimension_numbers = #tpu.dot_dimension_numbers<[1], [0], [0], [1], [0, 0, 1, 1], [], []>} : vector<8x1024xbf16>, vector<1024x256xbf16>, vector<8x256xf32> -> vector<8x256xf32>
    %c0_34 = arith.constant 0 : index
    %c0_35 = arith.constant 0 : index
    %130 = vector.load %arg4[%c0_34, %c0_35] : memref<1x256xf32, #tpu.memory_space<vmem>>, vector<1x256xf32>
    %131 = vector.broadcast %130 : vector<1x256xf32> to vector<8x256xf32>
    %132 = arith.addf %129, %131 : vector<8x256xf32>
    %cst_36 = arith.constant 2.000000e+01 : f32
    %133 = vector.broadcast %cst_36 : f32 to vector<8x256xf32>
    %134 = arith.minimumf %132, %133 : vector<8x256xf32>
    %135 = math.exp %134 : vector<8x256xf32>
    %cst_37 = arith.constant 2.000000e+00 : f32
    %136 = vector.broadcast %cst_37 : f32 to vector<8x256xf32>
    %137 = arith.addf %135, %136 : vector<8x256xf32>
    %138 = arith.mulf %135, %137 : vector<8x256xf32>
    %139 = arith.mulf %132, %138 : vector<8x256xf32>
    %cst_38 = arith.constant 2.000000e+00 : f32
    %140 = vector.broadcast %cst_38 : f32 to vector<8x256xf32>
    %141 = arith.addf %138, %140 : vector<8x256xf32>
    %142 = tpu.reciprocal %141 {approx = true} : vector<8x256xf32> -> vector<8x256xf32>
    %143 = arith.mulf %139, %142 : vector<8x256xf32>
    %cst_39 = arith.constant 2.000000e+01 : f32
    %144 = vector.broadcast %cst_39 : f32 to vector<8x256xf32>
    %145 = arith.cmpf ogt, %132, %144 : vector<8x256xf32>
    %146 = arith.select %145, %132, %143 : vector<8x256xi1>, vector<8x256xf32>
    %c2_i32_40 = arith.constant 2 : i32
    %147 = tpu.memref_slice %arg13[%c2_i32_40] : memref<3x!tpu.dma_semaphore, #tpu.memory_space<semaphore_mem>> -> memref<1x!tpu.dma_semaphore, #tpu.memory_space<semaphore_mem>>
    %148 = tpu.memref_squeeze %147 : memref<1x!tpu.dma_semaphore, #tpu.memory_space<semaphore_mem>> -> memref<!tpu.dma_semaphore, #tpu.memory_space<semaphore_mem>>
    tpu.wait_dma2 semaphore(%148 : memref<!tpu.dma_semaphore, #tpu.memory_space<semaphore_mem>>) src(%arg8 : memref<256x128xbf16, #tpu.memory_space<any>>) dst(%arg12 : memref<256x128xbf16, #tpu.memory_space<vmem>>)
    %149 = arith.truncf %146 : vector<8x256xf32> to vector<8x256xbf16>
    %c0_41 = arith.constant 0 : index
    %c0_42 = arith.constant 0 : index
    %150 = vector.load %arg12[%c0_41, %c0_42] : memref<256x128xbf16, #tpu.memory_space<vmem>>, vector<256x128xbf16>
    %cst_43 = arith.constant dense<0.000000e+00> : vector<8x128xf32>
    %151 = tpu.matmul %149, %150, %cst_43 {dimension_numbers = #tpu.dot_dimension_numbers<[1], [0], [0], [1], [0, 0, 1, 1], [], []>} : vector<8x256xbf16>, vector<256x128xbf16>, vector<8x128xf32> -> vector<8x128xf32>
    %c0_44 = arith.constant 0 : index
    %c0_45 = arith.constant 0 : index
    %152 = vector.load %arg5[%c0_44, %c0_45] : memref<1x128xf32, #tpu.memory_space<vmem>>, vector<1x128xf32>
    %153 = vector.broadcast %152 : vector<1x128xf32> to vector<8x128xf32>
    %154 = arith.addf %151, %153 : vector<8x128xf32>
    %c0_46 = arith.constant 0 : index
    %c0_47 = arith.constant 0 : index
    %155 = vector.load %arg9[%c0_46, %c0_47] : memref<8x128xf32, #tpu.memory_space<vmem>>, vector<8x128xf32>
    tpu.vector_store %arg9[%c0_46, %c0_47], %154 {strides = array<i32>} : memref<8x128xf32, #tpu.memory_space<vmem>>, vector<8x128xf32>,
    return
  }
}

</mosaic_0001>

<llo_original>
// kernel: bnet_forward.1
$region0: #{bnet_forward.1}
  #allocation0 [shape = 'u32[]', space=smem, size = 0x4, offset = 0x4, fixed_abs, tag = 'smem constant byte address 0x4 - core index']
  #allocation1 [shape = 'u32[144,128]{1,0:T(1,128)}', space=vmem, size = 0x12000, scoped, tag = 'internal scratch']
  #allocation2 [shape = 'bf16[32,1024]{1,0:T(16,128)(2,1)}', space=vmem, size = 0x10000, scoped, tag = 'scratch operand']
  #allocation3 [shape = 'bf16[1024,256]{1,0:T(16,128)(2,1)}', space=vmem, size = 0x80000, scoped, tag = 'scratch operand']
  #allocation4 [shape = 'bf16[256,128]{1,0:T(16,128)(2,1)}', space=vmem, size = 0x10000, scoped, tag = 'scratch operand']
  #allocation5 [shape = 's32[3]{0}', space=sflag, size = 0xc, scoped, tag = 'scratch operand']
  #allocation8 [shape = 's32[]', space=sflag, size = 0x4, offset = 0, fixed_abs, tag = 'sflag constant byte address 0x0 - dummy sync flag']
  #allocation10 [shape = 's32[]', space=sflag, size = 0x4, offset = 0, fixed_abs, tag = 'sflag constant byte address 0x0 - dummy sync flag']
  #allocation12 [shape = 's32[]', space=sflag, size = 0x4, offset = 0, fixed_abs, tag = 'sflag constant byte address 0x0 - dummy sync flag']
  %s0 = inlined_call_operand.vmem [shape: f32[8,256], index: 0, kind: input, shape index: {}]
  %s1 = inlined_call_operand.vmem [shape: f32[32,4], index: 1, kind: input, shape index: {}]
  %s2 = inlined_call_operand.vmem [shape: f32[32,1], index: 2, kind: input, shape index: {}]
  %s3 = inlined_call_operand.hbm [shape: f32[1,1024], index: 3, kind: input, shape index: {}]
  %s4 = inlined_call_operand.vmem [shape: f32[1,256], index: 4, kind: input, shape index: {}]
  %s5 = inlined_call_operand.vmem [shape: f32[1,128], index: 5, kind: input, shape index: {}]
  %s6 = inlined_call_operand.hbm [shape: bf16[32,1024], index: 6, kind: input, shape index: {}]
  %s7 = inlined_call_operand.hbm [shape: bf16[1024,256], index: 7, kind: input, shape index: {}]
  %s8 = inlined_call_operand.vmem [shape: bf16[256,128], index: 8, kind: input, shape index: {}]
  %s9 = inlined_call_operand.vmem [shape: f32[8,128], index: 9, kind: output, shape index: {}]
  %s10 = sld [smem:[#allocation0]]
  $region72: #{bnet_forward.1} parent=0
    _
  %s12 = ssub.s32 1, %s10
  %s13 = scalar_select 0, %s12, %s10
  $region1: #{bnet_forward.1} parent=0
    #allocation6 [shape = 'u8[4096]{0}', space=vmem, size = 0x1000, scoped, tag = 'input window, operand 3, single buffered']
    #allocation7 [shape = 's32[1]{0}', space=sflag, size = 0x4, scoped, tag = 'scoped memory for bnet_forward.1']
    #allocation9 [shape = 'u32[9]{0}', space=smem, size = 0x24, scoped, tag = 'DMA stride descriptor']
    #allocation11 [shape = 'u32[9]{0}', space=smem, size = 0x24, scoped, tag = 'DMA stride descriptor']
    %14 = vsyncpa [#allocation7], 0
    // Predicated region
    $region2: #{bnet_forward.1} parent=1 // pred_check
      _
    $region3: #{bnet_forward.1} parent=1 // pred_check_branch
      %16 = sbr.rel (0) target = $region5
    $region4: #{bnet_forward.1} parent=1 // pred_region
      _
    $region5: #{bnet_forward.1} parent=1 // pred_fallthru
      _
    // Predicated region
    $region6: #{bnet_forward.1} parent=1 // pred_check
      _
    $region7: #{bnet_forward.1} parent=1 // pred_check_branch
      %18 = sbr.rel (0) target = $region9
    $region8: #{bnet_forward.1} parent=1 // pred_region
      _
    $region9: #{bnet_forward.1} parent=1 // pred_fallthru
      _
    // Predicated region
    $region10: #{bnet_forward.1} parent=1 // pred_check
      _
    $region11: #{bnet_forward.1} parent=1 // pred_check_branch
      %20 = sbr.rel (0) target = $region13
    $region12: #{bnet_forward.1} parent=1 // pred_region
      _
    $region13: #{bnet_forward.1} parent=1 // pred_fallthru
      _
    // Predicated region
    $region14: #{bnet_forward.1} parent=1 // pred_check
      _
    $region15: #{bnet_forward.1} parent=1 // pred_check_branch
      %22 = sbr.rel (0) target = $region17
    $region16: #{bnet_forward.1} parent=1 // pred_region
      %s24 = ssub.s32 128, 128
      %25 = vsyncadd [#allocation7], %s24
      %s27 = sshll.u32 [#allocation6], 4
      %s28 = int_to_ptr.vmem [resolvable:$true] %s27
      %30 = dma.hbm_to_vmem [thread:$0]  %s3, 128, %s28, [#allocation7]
    $region17: #{bnet_forward.1} parent=1 // pred_fallthru
      _
    // Predicated region
    $region18: #{bnet_forward.1} parent=1 // pred_check
      _
    $region19: #{bnet_forward.1} parent=1 // pred_check_branch
      %32 = sbr.rel (0) target = $region21
    $region20: #{bnet_forward.1} parent=1 // pred_region
      _
    $region21: #{bnet_forward.1} parent=1 // pred_fallthru
      _
    // Predicated region
    $region22: #{bnet_forward.1} parent=1 // pred_check
      _
    $region23: #{bnet_forward.1} parent=1 // pred_check_branch
      %34 = sbr.rel (0) target = $region25
    $region24: #{bnet_forward.1} parent=1 // pred_region
      _
    $region25: #{bnet_forward.1} parent=1 // pred_fallthru
      _
    // Predicated region
    $region26: #{bnet_forward.1} parent=1 // pred_check
      _
    $region27: #{bnet_forward.1} parent=1 // pred_check_branch
      %36 = sbr.rel (0) target = $region29
    $region28: #{bnet_forward.1} parent=1 // pred_region
      %37 = dma.done [#allocation7], 128
    $region29: #{bnet_forward.1} parent=1 // pred_fallthru
      _
    %s40 = sshll.u32 1, 14
    %s41 = sxor.u32 4294967295, %s40
    %s43 = sld [smem:[#allocation0]]
    %s44 = sadd.s32 2, %s43
    %s46 = sshll.u32 7, 26
    %s47 = sxor.u32 4294967295, %s46
    %s48 = sand.u32 0, %s47
    %s49 = sshll.u32 %s44, 26
    %s50 = sor.u32 %s48, %s49
    %s51 = sshll.u32 [#allocation2], 4
    %s52 = int_to_ptr.vmem [resolvable:$true] %s51
    %55 = sst [smem:[#allocation9]] 1024
    %s56 = scalar_lea.smem [#allocation9], 1
    %57 = sst [smem:[%s56]] 1024
    %s58 = scalar_lea.smem [#allocation9], 2
    %59 = sst [smem:[%s58]] 8
    %s60 = scalar_lea.smem [#allocation9], 3
    %61 = sst [smem:[%s60]] 64
    %s62 = scalar_lea.smem [#allocation9], 4
    %63 = sst [smem:[%s62]] 128
    %s64 = scalar_lea.smem [#allocation9], 5
    %65 = sst [smem:[%s64]] 2
    %s66 = scalar_lea.smem [#allocation9], 6
    %67 = sst [smem:[%s66]] 512
    %s68 = scalar_lea.smem [#allocation9], 7
    %69 = sst [smem:[%s68]] 64
    %s70 = scalar_lea.smem [#allocation9], 8
    %71 = sst [smem:[%s70]] 4
    %73 = dma.general %s6, 2048, %s52, [#allocation5], [#allocation8], [#allocation9], %s50, 0
    %s74 = scalar_lea.sflag [#allocation5], 1
    %s76 = sshll.u32 1, 14
    %s77 = sxor.u32 4294967295, %s76
    %s79 = sadd.s32 2, %s43
    %s81 = sshll.u32 7, 26
    %s82 = sxor.u32 4294967295, %s81
    %s83 = sand.u32 0, %s82
    %s84 = sshll.u32 %s79, 26
    %s85 = sor.u32 %s83, %s84
    %s86 = sshll.u32 [#allocation3], 4
    %s87 = int_to_ptr.vmem [resolvable:$true] %s86
    %90 = sst [smem:[#allocation11]] 256
    %s91 = scalar_lea.smem [#allocation11], 1
    %92 = sst [smem:[%s91]] 256
    %s93 = scalar_lea.smem [#allocation11], 2
    %94 = sst [smem:[%s93]] 2
    %s95 = scalar_lea.smem [#allocation11], 3
    %96 = sst [smem:[%s95]] 64
    %s97 = scalar_lea.smem [#allocation11], 4
    %98 = sst [smem:[%s97]] 128
    %s99 = scalar_lea.smem [#allocation11], 5
    %100 = sst [smem:[%s99]] 2
    %s101 = scalar_lea.smem [#allocation11], 6
    %102 = sst [smem:[%s101]] 128
    %s103 = scalar_lea.smem [#allocation11], 7
    %104 = sst [smem:[%s103]] 64
    %s105 = scalar_lea.smem [#allocation11], 8
    %106 = sst [smem:[%s105]] 4
    %108 = dma.general %s7, 16384, %s87, %s74, [#allocation10], [#allocation11], %s85, 0
    %s109 = scalar_lea.sflag [#allocation5], 2
    %p111 = scmp.lt.u32.totalorder 128, 8
    %p112 = pneg %p111
    // Predicated region
    $region30: #{bnet_forward.1} parent=1 // pred_check
      _
    $region31: #{bnet_forward.1} parent=1 // pred_check_branch
      %114 = sbr.rel (%p111) target = $region33
    $region32: #{bnet_forward.1} parent=1 // pred_region
      %s129 = sand.u32 128, 7
      %p130 = scmp.eq.s32.totalorder %s129, 0
      // Predicated region
      $region45: #{bnet_forward.1} parent=32 // pred_check
        %p131 = pneg %p130
      $region46: #{bnet_forward.1} parent=32 // pred_check_branch
        %133 = sbr.rel (%p131) target = $region48
      $region47: #{bnet_forward.1} parent=32 // pred_region
        loop: start=0, step=1, limit=1
        $region49: #{bnet_forward.1} parent=47 // loop_pre_header
          _
        $region50: #{bnet_forward.1} parent=47 // loop_header
          %s135 = sphi 0, %s139
          %p136 = scmp.ge.s32.totalorder %s135, 1
          %s140 = sphi %s8, %s8
          %s141 = sphi [#allocation4], [#allocation4]
        $region51: #{bnet_forward.1} parent=47 // loop_header_branch
          %138 = sbr.rel (%p136) target = $region55
        $region52: #{bnet_forward.1} parent=47 // loop_body
          %v142 = vld [vmem:[%s140] sm:$0xff]
          %143 = vst [vmem:[%s141] sm:$0xff] %v142
          %v144 = vld [vmem:[%s140 + $0x8] sm:$0xff]
          %145 = vst [vmem:[%s141 + $0x8] sm:$0xff] %v144
          %v146 = vld [vmem:[%s140 + $0x10] sm:$0xff]
          %147 = vst [vmem:[%s141 + $0x10] sm:$0xff] %v146
          %v148 = vld [vmem:[%s140 + $0x18] sm:$0xff]
          %149 = vst [vmem:[%s141 + $0x18] sm:$0xff] %v148
          %v150 = vld [vmem:[%s140 + $0x20] sm:$0xff]
          %151 = vst [vmem:[%s141 + $0x20] sm:$0xff] %v150
          %v152 = vld [vmem:[%s140 + $0x28] sm:$0xff]
          %153 = vst [vmem:[%s141 + $0x28] sm:$0xff] %v152
          %v154 = vld [vmem:[%s140 + $0x30] sm:$0xff]
          %155 = vst [vmem:[%s141 + $0x30] sm:$0xff] %v154
          %v156 = vld [vmem:[%s140 + $0x38] sm:$0xff]
          %157 = vst [vmem:[%s141 + $0x38] sm:$0xff] %v156
          %v158 = vld [vmem:[%s140 + $0x40] sm:$0xff]
          %159 = vst [vmem:[%s141 + $0x40] sm:$0xff] %v158
          %v160 = vld [vmem:[%s140 + $0x48] sm:$0xff]
          %161 = vst [vmem:[%s141 + $0x48] sm:$0xff] %v160
          %v162 = vld [vmem:[%s140 + $0x50] sm:$0xff]
          %163 = vst [vmem:[%s141 + $0x50] sm:$0xff] %v162
          %v164 = vld [vmem:[%s140 + $0x58] sm:$0xff]
          %165 = vst [vmem:[%s141 + $0x58] sm:$0xff] %v164
          %v166 = vld [vmem:[%s140 + $0x60] sm:$0xff]
          %167 = vst [vmem:[%s141 + $0x60] sm:$0xff] %v166
          %v168 = vld [vmem:[%s140 + $0x68] sm:$0xff]
          %169 = vst [vmem:[%s141 + $0x68] sm:$0xff] %v168
          %v170 = vld [vmem:[%s140 + $0x70] sm:$0xff]
          %171 = vst [vmem:[%s141 + $0x70] sm:$0xff] %v170
          %v172 = vld [vmem:[%s140 + $0x78] sm:$0xff]
          %173 = vst [vmem:[%s141 + $0x78] sm:$0xff] %v172
        $region53: #{bnet_forward.1} parent=47 // loop_footer
          %s139 = sadd.s32 1, %s135
        $region54: #{bnet_forward.1} parent=47 // loop_footer_branch
          %134 = sbr.rel target = $region50
        $region55: #{bnet_forward.1} parent=47 // loop_exit
          _
      $region48: #{bnet_forward.1} parent=32 // pred_fallthru
        _
      %p174 = pneg %p130
      // Predicated region
      $region56: #{bnet_forward.1} parent=32 // pred_check
        _
      $region57: #{bnet_forward.1} parent=32 // pred_check_branch
        %176 = sbr.rel (%p130) target = $region59
      $region58: #{bnet_forward.1} parent=32 // pred_region
        %s177 = sand.u32 128, 7
      $region59: #{bnet_forward.1} parent=32 // pred_fallthru
        _
    $region33: #{bnet_forward.1} parent=1 // pred_fallthru
      _
    // Predicated region
    $region34: #{bnet_forward.1} parent=1 // pred_check
      %p115 = pneg %p111
    $region35: #{bnet_forward.1} parent=1 // pred_check_branch
      %117 = sbr.rel (%p115) target = $region37
    $region36: #{bnet_forward.1} parent=1 // pred_region
      %s118 = sshllo.u32 0, 128
      loop: start=0, step=1, limit=1
      $region38: #{bnet_forward.1} parent=36 // loop_pre_header
        _
      $region39: #{bnet_forward.1} parent=36 // loop_header
        %s120 = sphi 0, %s124
        %p121 = scmp.ge.s32.totalorder %s120, 1
        %s125 = sphi %s8, %s8
        %s126 = sphi [#allocation4], [#allocation4]
      $region40: #{bnet_forward.1} parent=36 // loop_header_branch
        %123 = sbr.rel (%p121) target = $region44
      $region41: #{bnet_forward.1} parent=36 // loop_body
        %v127 = vld [vmem:[%s125] sm:%s118]
        %128 = vst [vmem:[%s126] sm:%s118] %v127
      $region42: #{bnet_forward.1} parent=36 // loop_footer
        %s124 = sadd.s32 1, %s120
      $region43: #{bnet_forward.1} parent=36 // loop_footer_branch
        %119 = sbr.rel target = $region39
      $region44: #{bnet_forward.1} parent=36 // loop_exit
        _
    $region37: #{bnet_forward.1} parent=1 // pred_fallthru
      _
    // Predicated region
    $region60: #{bnet_forward.1} parent=1 // pred_check
      _
    $region61: #{bnet_forward.1} parent=1 // pred_check_branch
      %180 = sbr.rel (0) target = $region63
    $region62: #{bnet_forward.1} parent=1 // pred_region
      %181 = vsyncadd %s109, 2048
    $region63: #{bnet_forward.1} parent=1 // pred_fallthru
      _
    %v182 = vld [vmem:[%s0] sm:$0xff]
    %v183 = vld [vmem:[%s0 + $0x8] sm:$0xff]
    %v184 = vadd.f32 %v182, %v183
    %185 = vadd.xlane.f32.xlu0 %v184
    %v186 = vpop.xlane.xlu0 %185
    %v187 = vrcp.pop 256.0
    %v188 = vmul.f32 %v186, %v187
    %v189 = vsub.f32 %v182, %v188
    %v190 = vsub.f32 %v183, %v188
    %v191 = vmul.f32 %v189, %v189
    %v192 = vmul.f32 %v190, %v190
    %v193 = vadd.f32 %v191, %v192
    %194 = vadd.xlane.f32.xlu0 %v193
    %v195 = vpop.xlane.xlu0 %194
    %v196 = vmul.f32 %v195, 0.003921569
    %v197 = vadd.f32 %v196, 1e-12
    %v198 = vrsqrt.pop %v197
    %v199 = vmul.f32 %v189, %v198
    %v200 = vmul.f32 %v190, %v198
    %v201 = vld [vmem:[%s1] sm:$0xff]
    %v202 = vld [vmem:[%s1 + $0x8] sm:$0xff]
    %v203 = vld [vmem:[%s1 + $0x10] sm:$0xff]
    %v204 = vld [vmem:[%s1 + $0x18] sm:$0xff]
    %v205 = vld [vmem:[%s2] sm:$0xff]
    %v206 = vld [vmem:[%s2 + $0x8] sm:$0xff]
    %v207 = vld [vmem:[%s2 + $0x10] sm:$0xff]
    %v208 = vld [vmem:[%s2 + $0x18] sm:$0xff]
    %v209 = vlaneseq
    %v210 = vand.u32 %v209, 127
    %212 = vset.pattern.permute.xlu0 0
    %213 = vperm.xlu0 %212, %v201
    %v214 = vpop.permute.xlu0 %213
    %217 = vset.pattern.permute.xlu0 0
    %218 = vperm.xlu0 %217, %v202
    %v219 = vpop.permute.xlu0 %218
    %222 = vset.pattern.permute.xlu0 0
    %223 = vperm.xlu0 %222, %v203
    %v224 = vpop.permute.xlu0 %223
    %227 = vset.pattern.permute.xlu0 0
    %228 = vperm.xlu0 %227, %v204
    %v229 = vpop.permute.xlu0 %228
    %v231 = vlaneseq
    %v232 = vshrl.u32 %v231, 7
    %v233 = vsub.s32 0, %v232
    %v234 = vrot.slane %v199, %v233
    %v235 = vlaneseq
    %v236 = vshrl.u32 %v235, 7
    %v237 = vsub.s32 0, %v236
    %v238 = vrot.slane %v200, %v237
    %v239 = vmul.f32 %v214, %v234
    %v240 = vmul.f32 %v214, %v238
    %v241 = vmul.f32 %v219, %v234
    %v242 = vmul.f32 %v219, %v238
    %v243 = vmul.f32 %v224, %v234
    %v244 = vmul.f32 %v224, %v238
    %v245 = vmul.f32 %v229, %v234
    %v246 = vmul.f32 %v229, %v238
    %247 = vset.pattern.permute.xlu0 1
    %248 = vperm.xlu0 %247, %v201
    %v249 = vpop.permute.xlu0 %248
    %251 = vset.pattern.permute.xlu0 1
    %252 = vperm.xlu0 %251, %v202
    %v253 = vpop.permute.xlu0 %252
    %255 = vset.pattern.permute.xlu0 1
    %256 = vperm.xlu0 %255, %v203
    %v257 = vpop.permute.xlu0 %256
    %259 = vset.pattern.permute.xlu0 1
    %260 = vperm.xlu0 %259, %v204
    %v261 = vpop.permute.xlu0 %260
    %v263 = vlaneseq
    %v264 = vshrl.u32 %v263, 7
    %v265 = vsub.s32 1, %v264
    %v266 = vrot.slane %v199, %v265
    %v267 = vlaneseq
    %v268 = vshrl.u32 %v267, 7
    %v269 = vsub.s32 1, %v268
    %v270 = vrot.slane %v200, %v269
    %v271 = vmul.f32 %v249, %v266
    %v272 = vmul.f32 %v249, %v270
    %v273 = vmul.f32 %v253, %v266
    %v274 = vmul.f32 %v253, %v270
    %v275 = vmul.f32 %v257, %v266
    %v276 = vmul.f32 %v257, %v270
    %v277 = vmul.f32 %v261, %v266
    %v278 = vmul.f32 %v261, %v270
    %v279 = vadd.f32 %v239, %v271
    %v280 = vadd.f32 %v240, %v272
    %v281 = vadd.f32 %v241, %v273
    %v282 = vadd.f32 %v242, %v274
    %v283 = vadd.f32 %v243, %v275
    %v284 = vadd.f32 %v244, %v276
    %v285 = vadd.f32 %v245, %v277
    %v286 = vadd.f32 %v246, %v278
    %287 = vset.pattern.permute.xlu0 2
    %288 = vperm.xlu0 %287, %v201
    %v289 = vpop.permute.xlu0 %288
    %291 = vset.pattern.permute.xlu0 2
    %292 = vperm.xlu0 %291, %v202
    %v293 = vpop.permute.xlu0 %292
    %295 = vset.pattern.permute.xlu0 2
    %296 = vperm.xlu0 %295, %v203
    %v297 = vpop.permute.xlu0 %296
    %299 = vset.pattern.permute.xlu0 2
    %300 = vperm.xlu0 %299, %v204
    %v301 = vpop.permute.xlu0 %300
    %v303 = vlaneseq
    %v304 = vshrl.u32 %v303, 7
    %v305 = vsub.s32 2, %v304
    %v306 = vrot.slane %v199, %v305
    %v307 = vlaneseq
    %v308 = vshrl.u32 %v307, 7
    %v309 = vsub.s32 2, %v308
    %v310 = vrot.slane %v200, %v309
    %v311 = vmul.f32 %v289, %v306
    %v312 = vmul.f32 %v289, %v310
    %v313 = vmul.f32 %v293, %v306
    %v314 = vmul.f32 %v293, %v310
    %v315 = vmul.f32 %v297, %v306
    %v316 = vmul.f32 %v297, %v310
    %v317 = vmul.f32 %v301, %v306
    %v318 = vmul.f32 %v301, %v310
    %v319 = vadd.f32 %v279, %v311
    %v320 = vadd.f32 %v280, %v312
    %v321 = vadd.f32 %v281, %v313
    %v322 = vadd.f32 %v282, %v314
    %v323 = vadd.f32 %v283, %v315
    %v324 = vadd.f32 %v284, %v316
    %v325 = vadd.f32 %v285, %v317
    %v326 = vadd.f32 %v286, %v318
    %327 = vset.pattern.permute.xlu0 3
    %328 = vperm.xlu0 %327, %v201
    %v329 = vpop.permute.xlu0 %328
    %331 = vset.pattern.permute.xlu0 3
    %332 = vperm.xlu0 %331, %v202
    %v333 = vpop.permute.xlu0 %332
    %335 = vset.pattern.permute.xlu0 3
    %336 = vperm.xlu0 %335, %v203
    %v337 = vpop.permute.xlu0 %336
    %339 = vset.pattern.permute.xlu0 3
    %340 = vperm.xlu0 %339, %v204
    %v341 = vpop.permute.xlu0 %340
    %v343 = vlaneseq
    %v344 = vshrl.u32 %v343, 7
    %v345 = vsub.s32 3, %v344
    %v346 = vrot.slane %v199, %v345
    %v347 = vlaneseq
    %v348 = vshrl.u32 %v347, 7
    %v349 = vsub.s32 3, %v348
    %v350 = vrot.slane %v200, %v349
    %v351 = vmul.f32 %v329, %v346
    %v352 = vmul.f32 %v329, %v350
    %v353 = vmul.f32 %v333, %v346
    %v354 = vmul.f32 %v333, %v350
    %v355 = vmul.f32 %v337, %v346
    %v356 = vmul.f32 %v337, %v350
    %v357 = vmul.f32 %v341, %v346
    %v358 = vmul.f32 %v341, %v350
    %v359 = vadd.f32 %v319, %v351
    %v360 = vadd.f32 %v320, %v352
    %v361 = vadd.f32 %v321, %v353
    %v362 = vadd.f32 %v322, %v354
    %v363 = vadd.f32 %v323, %v355
    %v364 = vadd.f32 %v324, %v356
    %v365 = vadd.f32 %v325, %v357
    %v366 = vadd.f32 %v326, %v358
    %368 = vset.pattern.permute.xlu0 0
    %369 = vperm.xlu0 %368, %v205
    %v370 = vpop.permute.xlu0 %369
    %373 = vset.pattern.permute.xlu0 0
    %374 = vperm.xlu0 %373, %v206
    %v375 = vpop.permute.xlu0 %374
    %378 = vset.pattern.permute.xlu0 0
    %379 = vperm.xlu0 %378, %v207
    %v380 = vpop.permute.xlu0 %379
    %383 = vset.pattern.permute.xlu0 0
    %384 = vperm.xlu0 %383, %v208
    %v385 = vpop.permute.xlu0 %384
    %v387 = vadd.f32 %v359, %v370
    %v388 = vadd.f32 %v360, %v370
    %v389 = vadd.f32 %v361, %v375
    %v390 = vadd.f32 %v362, %v375
    %v391 = vadd.f32 %v363, %v380
    %v392 = vadd.f32 %v364, %v380
    %v393 = vadd.f32 %v365, %v385
    %v394 = vadd.f32 %v366, %v385
    %v395 = vmax.f32 %v387, 0.0
    %v396 = vmax.f32 %v388, 0.0
    %v397 = vmax.f32 %v389, 0.0
    %v398 = vmax.f32 %v390, 0.0
    %v399 = vmax.f32 %v391, 0.0
    %v400 = vmax.f32 %v392, 0.0
    %v401 = vmax.f32 %v393, 0.0
    %v402 = vmax.f32 %v394, 0.0
    %v403 = vadd.f32 %v395, %v396
    %404 = vadd.xlane.f32.xlu0 %v403
    %v405 = vpop.xlane.xlu0 %404
    %v406 = vadd.f32 %v397, %v398
    %407 = vadd.xlane.f32.xlu0 %v406
    %v408 = vpop.xlane.xlu0 %407
    %v409 = vadd.f32 %v399, %v400
    %410 = vadd.xlane.f32.xlu0 %v409
    %v411 = vpop.xlane.xlu0 %410
    %v412 = vadd.f32 %v401, %v402
    %413 = vadd.xlane.f32.xlu0 %v412
    %v414 = vpop.xlane.xlu0 %413
    %v415 = vmul.f32 %v405, 0.00390625
    %v416 = vmul.f32 %v408, 0.00390625
    %v417 = vmul.f32 %v411, 0.00390625
    %v418 = vmul.f32 %v414, 0.00390625
    %vm419 = vcmp.eq.s32.totalorder %v210, 0
    %v420 = vsel %vm419, %v415, 0.0
    %v421 = vsel %vm419, %v416, 0.0
    %v422 = vsel %vm419, %v417, 0.0
    %v423 = vsel %vm419, %v418, 0.0
    %v424 = vadd.f32 %v420, 0.0
    %v425 = vadd.f32 %v421, 0.0
    %v426 = vadd.f32 %v422, 0.0
    %v427 = vadd.f32 %v423, 0.0
    %v428 = vlaneseq
    %v429 = vshrl.u32 %v428, 7
    %v430 = vsub.s32 4, %v429
    %v431 = vrot.slane %v199, %v430
    %v432 = vlaneseq
    %v433 = vshrl.u32 %v432, 7
    %v434 = vsub.s32 4, %v433
    %v435 = vrot.slane %v200, %v434
    %v436 = vmul.f32 %v214, %v431
    %v437 = vmul.f32 %v214, %v435
    %v438 = vmul.f32 %v219, %v431
    %v439 = vmul.f32 %v219, %v435
    %v440 = vmul.f32 %v224, %v431
    %v441 = vmul.f32 %v224, %v435
    %v442 = vmul.f32 %v229, %v431
    %v443 = vmul.f32 %v229, %v435
    %v444 = vlaneseq
    %v445 = vshrl.u32 %v444, 7
    %v446 = vsub.s32 5, %v445
    %v447 = vrot.slane %v199, %v446
    %v448 = vlaneseq
    %v449 = vshrl.u32 %v448, 7
    %v450 = vsub.s32 5, %v449
    %v451 = vrot.slane %v200, %v450
    %v452 = vmul.f32 %v249, %v447
    %v453 = vmul.f32 %v249, %v451
    %v454 = vmul.f32 %v253, %v447
    %v455 = vmul.f32 %v253, %v451
    %v456 = vmul.f32 %v257, %v447
    %v457 = vmul.f32 %v257, %v451
    %v458 = vmul.f32 %v261, %v447
    %v459 = vmul.f32 %v261, %v451
    %v460 = vadd.f32 %v436, %v452
    %v461 = vadd.f32 %v437, %v453
    %v462 = vadd.f32 %v438, %v454
    %v463 = vadd.f32 %v439, %v455
    %v464 = vadd.f32 %v440, %v456
    %v465 = vadd.f32 %v441, %v457
    %v466 = vadd.f32 %v442, %v458
    %v467 = vadd.f32 %v443, %v459
    %v468 = vlaneseq
    %v469 = vshrl.u32 %v468, 7
    %v470 = vsub.s32 6, %v469
    %v471 = vrot.slane %v199, %v470
    %v472 = vlaneseq
    %v473 = vshrl.u32 %v472, 7
    %v474 = vsub.s32 6, %v473
    %v475 = vrot.slane %v200, %v474
    %v476 = vmul.f32 %v289, %v471
    %v477 = vmul.f32 %v289, %v475
    %v478 = vmul.f32 %v293, %v471
    %v479 = vmul.f32 %v293, %v475
    %v480 = vmul.f32 %v297, %v471
    %v481 = vmul.f32 %v297, %v475
    %v482 = vmul.f32 %v301, %v471
    %v483 = vmul.f32 %v301, %v475
    %v484 = vadd.f32 %v460, %v476
    %v485 = vadd.f32 %v461, %v477
    %v486 = vadd.f32 %v462, %v478
    %v487 = vadd.f32 %v463, %v479
    %v488 = vadd.f32 %v464, %v480
    %v489 = vadd.f32 %v465, %v481
    %v490 = vadd.f32 %v466, %v482
    %v491 = vadd.f32 %v467, %v483
    %v492 = vlaneseq
    %v493 = vshrl.u32 %v492, 7
    %v494 = vsub.s32 7, %v493
    %v495 = vrot.slane %v199, %v494
    %v496 = vlaneseq
    %v497 = vshrl.u32 %v496, 7
    %v498 = vsub.s32 7, %v497
    %v499 = vrot.slane %v200, %v498
    %v500 = vmul.f32 %v329, %v495
    %v501 = vmul.f32 %v329, %v499
    %v502 = vmul.f32 %v333, %v495
    %v503 = vmul.f32 %v333, %v499
    %v504 = vmul.f32 %v337, %v495
    %v505 = vmul.f32 %v337, %v499
    %v506 = vmul.f32 %v341, %v495
    %v507 = vmul.f32 %v341, %v499
    %v508 = vadd.f32 %v484, %v500
    %v509 = vadd.f32 %v485, %v501
    %v510 = vadd.f32 %v486, %v502
    %v511 = vadd.f32 %v487, %v503
    %v512 = vadd.f32 %v488, %v504
    %v513 = vadd.f32 %v489, %v505
    %v514 = vadd.f32 %v490, %v506
    %v515 = vadd.f32 %v491, %v507
    %v516 = vadd.f32 %v508, %v370
    %v517 = vadd.f32 %v509, %v370
    %v518 = vadd.f32 %v510, %v375
    %v519 = vadd.f32 %v511, %v375
    %v520 = vadd.f32 %v512, %v380
    %v521 = vadd.f32 %v513, %v380
    %v522 = vadd.f32 %v514, %v385
    %v523 = vadd.f32 %v515, %v385
    %v524 = vmax.f32 %v516, 0.0
    %v525 = vmax.f32 %v517, 0.0
    %v526 = vmax.f32 %v518, 0.0
    %v527 = vmax.f32 %v519, 0.0
    %v528 = vmax.f32 %v520, 0.0
    %v529 = vmax.f32 %v521, 0.0
    %v530 = vmax.f32 %v522, 0.0
    %v531 = vmax.f32 %v523, 0.0
    %v532 = vadd.f32 %v524, %v525
    %533 = vadd.xlane.f32.xlu0 %v532
    %v534 = vpop.xlane.xlu0 %533
    %v535 = vadd.f32 %v526, %v527
    %536 = vadd.xlane.f32.xlu0 %v535
    %v537 = vpop.xlane.xlu0 %536
    %v538 = vadd.f32 %v528, %v529
    %539 = vadd.xlane.f32.xlu0 %v538
    %v540 = vpop.xlane.xlu0 %539
    %v541 = vadd.f32 %v530, %v531
    %542 = vadd.xlane.f32.xlu0 %v541
    %v543 = vpop.xlane.xlu0 %542
    %v544 = vmul.f32 %v534, 0.00390625
    %v545 = vmul.f32 %v537, 0.00390625
    %v546 = vmul.f32 %v540, 0.00390625
    %v547 = vmul.f32 %v543, 0.00390625
    %vm548 = vcmp.eq.s32.totalorder %v210, 1
    %v549 = vsel %vm548, %v544, 0.0
    %v550 = vsel %vm548, %v545, 0.0
    %v551 = vsel %vm548, %v546, 0.0
    %v552 = vsel %vm548, %v547, 0.0
    %v553 = vadd.f32 %v424, %v549
    %v554 = vadd.f32 %v425, %v550
    %v555 = vadd.f32 %v426, %v551
    %v556 = vadd.f32 %v427, %v552
    %s557 = smul.u32 4, 4
    %s558 = smul.u32 %s557, 8
    %s559 = sshll.u32 %s558, 4
    %560 = dma.done [#allocation5], %s559
    %v561 = vpack.c.bf16 %v554, %v553
    %v562 = vpack.c.bf16 %v556, %v555
    %v563 = vld [vmem:[#allocation2] sm:$0xff]
    %v564 = vld [vmem:[#allocation2 + $0x8] sm:$0xff]
    %v565 = vld [vmem:[#allocation2 + $0x10] sm:$0xff]
    %v566 = vld [vmem:[#allocation2 + $0x18] sm:$0xff]
    %v567 = vld [vmem:[#allocation2 + $0x20] sm:$0xff]
    %v568 = vld [vmem:[#allocation2 + $0x28] sm:$0xff]
    %v569 = vld [vmem:[#allocation2 + $0x30] sm:$0xff]
    %v570 = vld [vmem:[#allocation2 + $0x38] sm:$0xff]
    %v571 = vld [vmem:[#allocation2 + $0x40] sm:$0xff]
    %v572 = vld [vmem:[#allocation2 + $0x48] sm:$0xff]
    %v573 = vld [vmem:[#allocation2 + $0x50] sm:$0xff]
    %v574 = vld [vmem:[#allocation2 + $0x58] sm:$0xff]
    %v575 = vld [vmem:[#allocation2 + $0x60] sm:$0xff]
    %v576 = vld [vmem:[#allocation2 + $0x68] sm:$0xff]
    %v577 = vld [vmem:[#allocation2 + $0x70] sm:$0xff]
    %v578 = vld [vmem:[#allocation2 + $0x78] sm:$0xff]
    %v579 = vld [vmem:[#allocation6] sm:$0xff]
    %v581 = vlaneseq
    %v582 = vshrl.u32 %v581, 7
    %v583 = vsub.s32 0, %v582
    %v584 = vrot.slane %v579, %v583
    %v585 = vlaneseq
    %v586 = vshrl.u32 %v585, 7
    %v587 = vsub.s32 1, %v586
    %v588 = vrot.slane %v579, %v587
    %v589 = vlaneseq
    %v590 = vshrl.u32 %v589, 7
    %v591 = vsub.s32 2, %v590
    %v592 = vrot.slane %v579, %v591
    %v593 = vlaneseq
    %v594 = vshrl.u32 %v593, 7
    %v595 = vsub.s32 3, %v594
    %v596 = vrot.slane %v579, %v595
    %v597 = vlaneseq
    %v598 = vshrl.u32 %v597, 7
    %v599 = vsub.s32 4, %v598
    %v600 = vrot.slane %v579, %v599
    %v601 = vlaneseq
    %v602 = vshrl.u32 %v601, 7
    %v603 = vsub.s32 5, %v602
    %v604 = vrot.slane %v579, %v603
    %v605 = vlaneseq
    %v606 = vshrl.u32 %v605, 7
    %v607 = vsub.s32 6, %v606
    %v608 = vrot.slane %v579, %v607
    %v609 = vlaneseq
    %v610 = vshrl.u32 %v609, 7
    %v611 = vsub.s32 7, %v610
    %v612 = vrot.slane %v579, %v611
    %621 = vxpose.xlu0.c.b16.start [1/8] %v561, 128
    %622 = vxpose.xlu0.c.b16.cont [2/8] %v562, 128
    %623 = vxpose.xlu0.c.b16.cont [3/8] 0, 128
    %624 = vxpose.xlu0.c.b16.cont [4/8] 0, 128
    %625 = vxpose.xlu0.c.b16.cont [5/8] 0, 128
    %626 = vxpose.xlu0.c.b16.cont [6/8] 0, 128
    %627 = vxpose.xlu0.c.b16.cont [7/8] 0, 128
    %628 = vxpose.xlu0.c.b16.end [8/8] 0, 128
    %v629 = vpop.trf.xlu0
    %v630 = vpop.trf.xlu0
    %v631 = vpop.trf.xlu0
    %v632 = vpop.trf.xlu0
    %v633 = vpop.trf.xlu0
    %v634 = vpop.trf.xlu0
    %v635 = vpop.trf.xlu0
    %v636 = vpop.trf.xlu0
    %vm637 = vcmask 261120
    %v639 = vsel %vm637, %v629, 0
    %641 = vmatprep.subr.bf16.mxu0 %v564
    %642 = vmatpush1.bf16.msra.mxu0 %v563
    %643 = vmatprep.subr.bf16.mxu0 %v572
    %644 = vmatpush1.bf16.msra.mxu0 %v571
    %645 = vmatprep.subr.bf16.mxu0 0
    %646 = vmatpush1.bf16.msra.mxu0 0
    %647 = vmatprep.subr.bf16.mxu0 0
    %648 = vmatpush1.bf16.msra.mxu0 0
    %649 = vmatprep.subr.bf16.mxu0 0
    %650 = vmatpush1.bf16.msra.mxu0 0
    %651 = vmatprep.subr.bf16.mxu0 0
    %652 = vmatpush1.bf16.msra.mxu0 0
    %653 = vmatprep.subr.bf16.mxu0 0
    %654 = vmatpush1.bf16.msra.mxu0 0
    %655 = vmatprep.subr.bf16.mxu0 0
    %656 = vmatpush1.bf16.msra.mxu0 0
    %657 = vmatprep.subr.bf16.mxu0 0
    %658 = vmatpush1.bf16.msra.mxu0 0
    %659 = vmatprep.subr.bf16.mxu0 0
    %660 = vmatpush1.bf16.msra.mxu0 0
    %661 = vmatprep.subr.bf16.mxu0 0
    %662 = vmatpush1.bf16.msra.mxu0 0
    %663 = vmatprep.subr.bf16.mxu0 0
    %664 = vmatpush1.bf16.msra.mxu0 0
    %665 = vmatprep.subr.bf16.mxu0 0
    %666 = vmatpush1.bf16.msra.mxu0 0
    %667 = vmatprep.subr.bf16.mxu0 0
    %668 = vmatpush1.bf16.msra.mxu0 0
    %669 = vmatprep.subr.bf16.mxu0 0
    %670 = vmatpush1.bf16.msra.mxu0 0
    %671 = vmatprep.subr.bf16.mxu0 0
    %672 = vmatpush1.bf16.msra.mxu0 0
    %673 = vmatprep.mubr.bf16.mxu0 0
    %674 = vmatmul.mubr.bf16.gmra.mrb[0].mxu0 %v639
    %v675 = vpop.f32.mrb[0].mxu0
    %v676 = vadd.f32 %v584, %v675
    %v677 = vpop.f32.mrb[0].mxu0
    %v678 = vadd.f32 %v588, %v677
    %v679 = vpop.f32.mrb[0].mxu0
    %v680 = vpop.f32.mrb[0].mxu0
    %681 = vdwg.mxu0
    %682 = vmatprep.subr.bf16.mxu0 %v566
    %683 = vmatpush1.bf16.msra.mxu0 %v565
    %684 = vmatprep.subr.bf16.mxu0 %v574
    %685 = vmatpush1.bf16.msra.mxu0 %v573
    %686 = vmatprep.subr.bf16.mxu0 0
    %687 = vmatpush1.bf16.msra.mxu0 0
    %688 = vmatprep.subr.bf16.mxu0 0
    %689 = vmatpush1.bf16.msra.mxu0 0
    %690 = vmatprep.subr.bf16.mxu0 0
    %691 = vmatpush1.bf16.msra.mxu0 0
    %692 = vmatprep.subr.bf16.mxu0 0
    %693 = vmatpush1.bf16.msra.mxu0 0
    %694 = vmatprep.subr.bf16.mxu0 0
    %695 = vmatpush1.bf16.msra.mxu0 0
    %696 = vmatprep.subr.bf16.mxu0 0
    %697 = vmatpush1.bf16.msra.mxu0 0
    %698 = vmatprep.subr.bf16.mxu0 0
    %699 = vmatpush1.bf16.msra.mxu0 0
    %700 = vmatprep.subr.bf16.mxu0 0
    %701 = vmatpush1.bf16.msra.mxu0 0
    %702 = vmatprep.subr.bf16.mxu0 0
    %703 = vmatpush1.bf16.msra.mxu0 0
    %704 = vmatprep.subr.bf16.mxu0 0
    %705 = vmatpush1.bf16.msra.mxu0 0
    %706 = vmatprep.subr.bf16.mxu0 0
    %707 = vmatpush1.bf16.msra.mxu0 0
    %708 = vmatprep.subr.bf16.mxu0 0
    %709 = vmatpush1.bf16.msra.mxu0 0
    %710 = vmatprep.subr.bf16.mxu0 0
    %711 = vmatpush1.bf16.msra.mxu0 0
    %712 = vmatprep.subr.bf16.mxu0 0
    %713 = vmatpush1.bf16.msra.mxu0 0
    %714 = vmatprep.mubr.bf16.mxu0 0
    %715 = vmatmul.mubr.bf16.gmra.mrb[0].mxu0 %v639
    %v716 = vpop.f32.mrb[0].mxu0
    %v717 = vadd.f32 %v592, %v716
    %v718 = vpop.f32.mrb[0].mxu0
    %v719 = vadd.f32 %v596, %v718
    %v720 = vpop.f32.mrb[0].mxu0
    %v721 = vpop.f32.mrb[0].mxu0
    %722 = vdwg.mxu0
    %723 = vmatprep.subr.bf16.mxu0 %v568
    %724 = vmatpush1.bf16.msra.mxu0 %v567
    %725 = vmatprep.subr.bf16.mxu0 %v576
    %726 = vmatpush1.bf16.msra.mxu0 %v575
    %727 = vmatprep.subr.bf16.mxu0 0
    %728 = vmatpush1.bf16.msra.mxu0 0
    %729 = vmatprep.subr.bf16.mxu0 0
    %730 = vmatpush1.bf16.msra.mxu0 0
    %731 = vmatprep.subr.bf16.mxu0 0
    %732 = vmatpush1.bf16.msra.mxu0 0
    %733 = vmatprep.subr.bf16.mxu0 0
    %734 = vmatpush1.bf16.msra.mxu0 0
    %735 = vmatprep.subr.bf16.mxu0 0
    %736 = vmatpush1.bf16.msra.mxu0 0
    %737 = vmatprep.subr.bf16.mxu0 0
    %738 = vmatpush1.bf16.msra.mxu0 0
    %739 = vmatprep.subr.bf16.mxu0 0
    %740 = vmatpush1.bf16.msra.mxu0 0
    %741 = vmatprep.subr.bf16.mxu0 0
    %742 = vmatpush1.bf16.msra.mxu0 0
    %743 = vmatprep.subr.bf16.mxu0 0
    %744 = vmatpush1.bf16.msra.mxu0 0
    %745 = vmatprep.subr.bf16.mxu0 0
    %746 = vmatpush1.bf16.msra.mxu0 0
    %747 = vmatprep.subr.bf16.mxu0 0
    %748 = vmatpush1.bf16.msra.mxu0 0
    %749 = vmatprep.subr.bf16.mxu0 0
    %750 = vmatpush1.bf16.msra.mxu0 0
    %751 = vmatprep.subr.bf16.mxu0 0
    %752 = vmatpush1.bf16.msra.mxu0 0
    %753 = vmatprep.subr.bf16.mxu0 0
    %754 = vmatpush1.bf16.msra.mxu0 0
    %755 = vmatprep.mubr.bf16.mxu0 0
    %756 = vmatmul.mubr.bf16.gmra.mrb[0].mxu0 %v639
    %v757 = vpop.f32.mrb[0].mxu0
    %v758 = vadd.f32 %v600, %v757
    %v759 = vpop.f32.mrb[0].mxu0
    %v760 = vadd.f32 %v604, %v759
    %v761 = vpop.f32.mrb[0].mxu0
    %v762 = vpop.f32.mrb[0].mxu0
    %763 = vdwg.mxu0
    %764 = vmatprep.subr.bf16.mxu0 %v570
    %765 = vmatpush1.bf16.msra.mxu0 %v569
    %766 = vmatprep.subr.bf16.mxu0 %v578
    %767 = vmatpush1.bf16.msra.mxu0 %v577
    %768 = vmatprep.subr.bf16.mxu0 0
    %769 = vmatpush1.bf16.msra.mxu0 0
    %770 = vmatprep.subr.bf16.mxu0 0
    %771 = vmatpush1.bf16.msra.mxu0 0
    %772 = vmatprep.subr.bf16.mxu0 0
    %773 = vmatpush1.bf16.msra.mxu0 0
    %774 = vmatprep.subr.bf16.mxu0 0
    %775 = vmatpush1.bf16.msra.mxu0 0
    %776 = vmatprep.subr.bf16.mxu0 0
    %777 = vmatpush1.bf16.msra.mxu0 0
    %778 = vmatprep.subr.bf16.mxu0 0
    %779 = vmatpush1.bf16.msra.mxu0 0
    %780 = vmatprep.subr.bf16.mxu0 0
    %781 = vmatpush1.bf16.msra.mxu0 0
    %782 = vmatprep.subr.bf16.mxu0 0
    %783 = vmatpush1.bf16.msra.mxu0 0
    %784 = vmatprep.subr.bf16.mxu0 0
    %785 = vmatpush1.bf16.msra.mxu0 0
    %786 = vmatprep.subr.bf16.mxu0 0
    %787 = vmatpush1.bf16.msra.mxu0 0
    %788 = vmatprep.subr.bf16.mxu0 0
    %789 = vmatpush1.bf16.msra.mxu0 0
    %790 = vmatprep.subr.bf16.mxu0 0
    %791 = vmatpush1.bf16.msra.mxu0 0
    %792 = vmatprep.subr.bf16.mxu0 0
    %793 = vmatpush1.bf16.msra.mxu0 0
    %794 = vmatprep.subr.bf16.mxu0 0
    %795 = vmatpush1.bf16.msra.mxu0 0
    %796 = vmatprep.mubr.bf16.mxu0 0
    %797 = vmatmul.mubr.bf16.gmra.mrb[0].mxu0 %v639
    %v798 = vpop.f32.mrb[0].mxu0
    %v799 = vadd.f32 %v608, %v798
    %v800 = vpop.f32.mrb[0].mxu0
    %v801 = vadd.f32 %v612, %v800
    %v802 = vpop.f32.mrb[0].mxu0
    %v803 = vpop.f32.mrb[0].mxu0
    %804 = vdwg.mxu0
    %v805 = vmin.f32 %v676, 20.0
    %v806 = vmin.f32 %v678, 20.0
    %v807 = vmin.f32 %v717, 20.0
    %v808 = vmin.f32 %v719, 20.0
    %v809 = vmin.f32 %v758, 20.0
    %v810 = vmin.f32 %v760, 20.0
    %v811 = vmin.f32 %v799, 20.0
    %v812 = vmin.f32 %v801, 20.0
    %v813 = vmul.f32 %v805, 1.442695
    %v814 = vpow.pop %v813
    %v815 = vmul.f32 %v806, 1.442695
    %v816 = vpow.pop %v815
    %v817 = vmul.f32 %v807, 1.442695
    %v818 = vpow.pop %v817
    %v819 = vmul.f32 %v808, 1.442695
    %v820 = vpow.pop %v819
    %v821 = vmul.f32 %v809, 1.442695
    %v822 = vpow.pop %v821
    %v823 = vmul.f32 %v810, 1.442695
    %v824 = vpow.pop %v823
    %v825 = vmul.f32 %v811, 1.442695
    %v826 = vpow.pop %v825
    %v827 = vmul.f32 %v812, 1.442695
    %v828 = vpow.pop %v827
    %v829 = vadd.f32 %v814, 2.0
    %v830 = vadd.f32 %v816, 2.0
    %v831 = vadd.f32 %v818, 2.0
    %v832 = vadd.f32 %v820, 2.0
    %v833 = vadd.f32 %v822, 2.0
    %v834 = vadd.f32 %v824, 2.0
    %v835 = vadd.f32 %v826, 2.0
    %v836 = vadd.f32 %v828, 2.0
    %v837 = vmul.f32 %v814, %v829
    %v838 = vmul.f32 %v816, %v830
    %v839 = vmul.f32 %v818, %v831
    %v840 = vmul.f32 %v820, %v832
    %v841 = vmul.f32 %v822, %v833
    %v842 = vmul.f32 %v824, %v834
    %v843 = vmul.f32 %v826, %v835
    %v844 = vmul.f32 %v828, %v836
    %v845 = vmul.f32 %v676, %v837
    %v846 = vmul.f32 %v678, %v838
    %v847 = vmul.f32 %v717, %v839
    %v848 = vmul.f32 %v719, %v840
    %v849 = vmul.f32 %v758, %v841
    %v850 = vmul.f32 %v760, %v842
    %v851 = vmul.f32 %v799, %v843
    %v852 = vmul.f32 %v801, %v844
    %v853 = vadd.f32 %v837, 2.0
    %v854 = vadd.f32 %v838, 2.0
    %v855 = vadd.f32 %v839, 2.0
    %v856 = vadd.f32 %v840, 2.0
    %v857 = vadd.f32 %v841, 2.0
    %v858 = vadd.f32 %v842, 2.0
    %v859 = vadd.f32 %v843, 2.0
    %v860 = vadd.f32 %v844, 2.0
    %v861 = vrcp.pop %v853
    %v862 = vrcp.pop %v854
    %v863 = vrcp.pop %v855
    %v864 = vrcp.pop %v856
    %v865 = vrcp.pop %v857
    %v866 = vrcp.pop %v858
    %v867 = vrcp.pop %v859
    %v868 = vrcp.pop %v860
    %v869 = vmul.f32 %v845, %v861
    %v870 = vmul.f32 %v846, %v862
    %v871 = vmul.f32 %v847, %v863
    %v872 = vmul.f32 %v848, %v864
    %v873 = vmul.f32 %v849, %v865
    %v874 = vmul.f32 %v850, %v866
    %v875 = vmul.f32 %v851, %v867
    %v876 = vmul.f32 %v852, %v868
    %vm877 = vcmp.gt.f32.partialorder %v676, 20.0
    %vm878 = vcmp.gt.f32.partialorder %v678, 20.0
    %vm879 = vcmp.gt.f32.partialorder %v717, 20.0
    %vm880 = vcmp.gt.f32.partialorder %v719, 20.0
    %vm881 = vcmp.gt.f32.partialorder %v758, 20.0
    %vm882 = vcmp.gt.f32.partialorder %v760, 20.0
    %vm883 = vcmp.gt.f32.partialorder %v799, 20.0
    %vm884 = vcmp.gt.f32.partialorder %v801, 20.0
    %v885 = vsel %vm877, %v676, %v869
    %v886 = vsel %vm878, %v678, %v870
    %v887 = vsel %vm879, %v717, %v871
    %v888 = vsel %vm880, %v719, %v872
    %v889 = vsel %vm881, %v758, %v873
    %v890 = vsel %vm882, %v760, %v874
    %v891 = vsel %vm883, %v799, %v875
    %v892 = vsel %vm884, %v801, %v876
    %s893 = smul.u32 4, 128
    %s894 = smul.u32 %s893, 2
    %s895 = sshll.u32 %s894, 4
    %896 = dma.done %s74, %s895
    %v897 = vpack.c.bf16 %v885, %v885
    %v898 = vpack.c.bf16 %v886, %v886
    %v899 = vpack.c.bf16 %v887, %v887
    %v900 = vpack.c.bf16 %v888, %v888
    %v901 = vpack.c.bf16 %v889, %v889
    %v902 = vpack.c.bf16 %v890, %v890
    %v903 = vpack.c.bf16 %v891, %v891
    %v904 = vpack.c.bf16 %v892, %v892
    %v905 = vld [vmem:[#allocation3] sm:$0xff]
    %v906 = vld [vmem:[#allocation3 + $0x8] sm:$0xff]
    %v907 = vld [vmem:[#allocation3 + $0x10] sm:$0xff]
    %v908 = vld [vmem:[#allocation3 + $0x18] sm:$0xff]
    %v909 = vld [vmem:[#allocation3 + $0x20] sm:$0xff]
    %v910 = vld [vmem:[#allocation3 + $0x28] sm:$0xff]
    %v911 = vld [vmem:[#allocation3 + $0x30] sm:$0xff]
    %v912 = vld [vmem:[#allocation3 + $0x38] sm:$0xff]
    %v913 = vld [vmem:[#allocation3 + $0x40] sm:$0xff]
    %v914 = vld [vmem:[#allocation3 + $0x48] sm:$0xff]
    %v915 = vld [vmem:[#allocation3 + $0x50] sm:$0xff]
    %v916 = vld [vmem:[#allocation3 + $0x58] sm:$0xff]
    %v917 = vld [vmem:[#allocation3 + $0x60] sm:$0xff]
    %v918 = vld [vmem:[#allocation3 + $0x68] sm:$0xff]
    %v919 = vld [vmem:[#allocation3 + $0x70] sm:$0xff]
    %v920 = vld [vmem:[#allocation3 + $0x78] sm:$0xff]
    %v921 = vld [vmem:[#allocation3 + $0x80] sm:$0xff]
    %v922 = vld [vmem:[#allocation3 + $0x88] sm:$0xff]
    %v923 = vld [vmem:[#allocation3 + $0x90] sm:$0xff]
    %v924 = vld [vmem:[#allocation3 + $0x98] sm:$0xff]
    %v925 = vld [vmem:[#allocation3 + $0xa0] sm:$0xff]
    %v926 = vld [vmem:[#allocation3 + $0xa8] sm:$0xff]
    %v927 = vld [vmem:[#allocation3 + $0xb0] sm:$0xff]
    %v928 = vld [vmem:[#allocation3 + $0xb8] sm:$0xff]
    %v929 = vld [vmem:[#allocation3 + $0xc0] sm:$0xff]
    %v930 = vld [vmem:[#allocation3 + $0xc8] sm:$0xff]
    %v931 = vld [vmem:[#allocation3 + $0xd0] sm:$0xff]
    %v932 = vld [vmem:[#allocation3 + $0xd8] sm:$0xff]
    %v933 = vld [vmem:[#allocation3 + $0xe0] sm:$0xff]
    %v934 = vld [vmem:[#allocation3 + $0xe8] sm:$0xff]
    %v935 = vld [vmem:[#allocation3 + $0xf0] sm:$0xff]
    %v936 = vld [vmem:[#allocation3 + $0xf8] sm:$0xff]
    %v937 = vld [vmem:[#allocation3 + $0x100] sm:$0xff]
    %v938 = vld [vmem:[#allocation3 + $0x108] sm:$0xff]
    %v939 = vld [vmem:[#allocation3 + $0x110] sm:$0xff]
    %v940 = vld [vmem:[#allocation3 + $0x118] sm:$0xff]
    %v941 = vld [vmem:[#allocation3 + $0x120] sm:$0xff]
    %v942 = vld [vmem:[#allocation3 + $0x128] sm:$0xff]
    %v943 = vld [vmem:[#allocation3 + $0x130] sm:$0xff]
    %v944 = vld [vmem:[#allocation3 + $0x138] sm:$0xff]
    %v945 = vld [vmem:[#allocation3 + $0x140] sm:$0xff]
    %v946 = vld [vmem:[#allocation3 + $0x148] sm:$0xff]
    %v947 = vld [vmem:[#allocation3 + $0x150] sm:$0xff]
    %v948 = vld [vmem:[#allocation3 + $0x158] sm:$0xff]
    %v949 = vld [vmem:[#allocation3 + $0x160] sm:$0xff]
    %v950 = vld [vmem:[#allocation3 + $0x168] sm:$0xff]
    %v951 = vld [vmem:[#allocation3 + $0x170] sm:$0xff]
    %v952 = vld [vmem:[#allocation3 + $0x178] sm:$0xff]
    %v953 = vld [vmem:[#allocation3 + $0x180] sm:$0xff]
    %v954 = vld [vmem:[#allocation3 + $0x188] sm:$0xff]
    %v955 = vld [vmem:[#allocation3 + $0x190] sm:$0xff]
    %v956 = vld [vmem:[#allocation3 + $0x198] sm:$0xff]
    %v957 = vld [vmem:[#allocation3 + $0x1a0] sm:$0xff]
    %v958 = vld [vmem:[#allocation3 + $0x1a8] sm:$0xff]
    %v959 = vld [vmem:[#allocation3 + $0x1b0] sm:$0xff]
    %v960 = vld [vmem:[#allocation3 + $0x1b8] sm:$0xff]
    %v961 = vld [vmem:[#allocation3 + $0x1c0] sm:$0xff]
    %v962 = vld [vmem:[#allocation3 + $0x1c8] sm:$0xff]
    %v963 = vld [vmem:[#allocation3 + $0x1d0] sm:$0xff]
    %v964 = vld [vmem:[#allocation3 + $0x1d8] sm:$0xff]
    %v965 = vld [vmem:[#allocation3 + $0x1e0] sm:$0xff]
    %v966 = vld [vmem:[#allocation3 + $0x1e8] sm:$0xff]
    %v967 = vld [vmem:[#allocation3 + $0x1f0] sm:$0xff]
    %v968 = vld [vmem:[#allocation3 + $0x1f8] sm:$0xff]
    %v969 = vld [vmem:[#allocation3 + $0x200] sm:$0xff]
    %v970 = vld [vmem:[#allocation3 + $0x208] sm:$0xff]
    %v971 = vld [vmem:[#allocation3 + $0x210] sm:$0xff]
    %v972 = vld [vmem:[#allocation3 + $0x218] sm:$0xff]
    %v973 = vld [vmem:[#allocation3 + $0x220] sm:$0xff]
    %v974 = vld [vmem:[#allocation3 + $0x228] sm:$0xff]
    %v975 = vld [vmem:[#allocation3 + $0x230] sm:$0xff]
    %v976 = vld [vmem:[#allocation3 + $0x238] sm:$0xff]
    %v977 = vld [vmem:[#allocation3 + $0x240] sm:$0xff]
    %v978 = vld [vmem:[#allocation3 + $0x248] sm:$0xff]
    %v979 = vld [vmem:[#allocation3 + $0x250] sm:$0xff]
    %v980 = vld [vmem:[#allocation3 + $0x258] sm:$0xff]
    %v981 = vld [vmem:[#allocation3 + $0x260] sm:$0xff]
    %v982 = vld [vmem:[#allocation3 + $0x268] sm:$0xff]
    %v983 = vld [vmem:[#allocation3 + $0x270] sm:$0xff]
    %v984 = vld [vmem:[#allocation3 + $0x278] sm:$0xff]
    %v985 = vld [vmem:[#allocation3 + $0x280] sm:$0xff]
    %v986 = vld [vmem:[#allocation3 + $0x288] sm:$0xff]
    %v987 = vld [vmem:[#allocation3 + $0x290] sm:$0xff]
    %v988 = vld [vmem:[#allocation3 + $0x298] sm:$0xff]
    %v989 = vld [vmem:[#allocation3 + $0x2a0] sm:$0xff]
    %v990 = vld [vmem:[#allocation3 + $0x2a8] sm:$0xff]
    %v991 = vld [vmem:[#allocation3 + $0x2b0] sm:$0xff]
    %v992 = vld [vmem:[#allocation3 + $0x2b8] sm:$0xff]
    %v993 = vld [vmem:[#allocation3 + $0x2c0] sm:$0xff]
    %v994 = vld [vmem:[#allocation3 + $0x2c8] sm:$0xff]
    %v995 = vld [vmem:[#allocation3 + $0x2d0] sm:$0xff]
    %v996 = vld [vmem:[#allocation3 + $0x2d8] sm:$0xff]
    %v997 = vld [vmem:[#allocation3 + $0x2e0] sm:$0xff]
    %v998 = vld [vmem:[#allocation3 + $0x2e8] sm:$0xff]
    %v999 = vld [vmem:[#allocation3 + $0x2f0] sm:$0xff]
    %v1000 = vld [vmem:[#allocation3 + $0x2f8] sm:$0xff]
    %v1001 = vld [vmem:[#allocation3 + $0x300] sm:$0xff]
    %v1002 = vld [vmem:[#allocation3 + $0x308] sm:$0xff]
    %v1003 = vld [vmem:[#allocation3 + $0x310] sm:$0xff]
    %v1004 = vld [vmem:[#allocation3 + $0x318] sm:$0xff]
    %v1005 = vld [vmem:[#allocation3 + $0x320] sm:$0xff]
    %v1006 = vld [vmem:[#allocation3 + $0x328] sm:$0xff]
    %v1007 = vld [vmem:[#allocation3 + $0x330] sm:$0xff]
    %v1008 = vld [vmem:[#allocation3 + $0x338] sm:$0xff]
    %v1009 = vld [vmem:[#allocation3 + $0x340] sm:$0xff]
    %v1010 = vld [vmem:[#allocation3 + $0x348] sm:$0xff]
    %v1011 = vld [vmem:[#allocation3 + $0x350] sm:$0xff]
    %v1012 = vld [vmem:[#allocation3 + $0x358] sm:$0xff]
    %v1013 = vld [vmem:[#allocation3 + $0x360] sm:$0xff]
    %v1014 = vld [vmem:[#allocation3 + $0x368] sm:$0xff]
    %v1015 = vld [vmem:[#allocation3 + $0x370] sm:$0xff]
    %v1016 = vld [vmem:[#allocation3 + $0x378] sm:$0xff]
    %v1017 = vld [vmem:[#allocation3 + $0x380] sm:$0xff]
    %v1018 = vld [vmem:[#allocation3 + $0x388] sm:$0xff]
    %v1019 = vld [vmem:[#allocation3 + $0x390] sm:$0xff]
    %v1020 = vld [vmem:[#allocation3 + $0x398] sm:$0xff]
    %v1021 = vld [vmem:[#allocation3 + $0x3a0] sm:$0xff]
    %v1022 = vld [vmem:[#allocation3 + $0x3a8] sm:$0xff]
    %v1023 = vld [vmem:[#allocation3 + $0x3b0] sm:$0xff]
    %v1024 = vld [vmem:[#allocation3 + $0x3b8] sm:$0xff]
    %v1025 = vld [vmem:[#allocation3 + $0x3c0] sm:$0xff]
    %v1026 = vld [vmem:[#allocation3 + $0x3c8] sm:$0xff]
    %v1027 = vld [vmem:[#allocation3 + $0x3d0] sm:$0xff]
    %v1028 = vld [vmem:[#allocation3 + $0x3d8] sm:$0xff]
    %v1029 = vld [vmem:[#allocation3 + $0x3e0] sm:$0xff]
    %v1030 = vld [vmem:[#allocation3 + $0x3e8] sm:$0xff]
    %v1031 = vld [vmem:[#allocation3 + $0x3f0] sm:$0xff]
    %v1032 = vld [vmem:[#allocation3 + $0x3f8] sm:$0xff]
    %v1033 = vld [vmem:[%s4] sm:$0x3]
    %v1035 = vlaneseq
    %v1036 = vshrl.u32 %v1035, 7
    %v1037 = vsub.s32 0, %v1036
    %v1038 = vrot.slane %v1033, %v1037
    %v1039 = vlaneseq
    %v1040 = vshrl.u32 %v1039, 7
    %v1041 = vsub.s32 1, %v1040
    %v1042 = vrot.slane %v1033, %v1041
    %1045 = vmatprep.subr.bf16.mxu0 %v906
    %1046 = vmatpush1.bf16.msra.mxu0 %v905
    %1047 = vmatprep.subr.bf16.mxu0 %v908
    %1048 = vmatpush1.bf16.msra.mxu0 %v907
    %1049 = vmatprep.subr.bf16.mxu0 %v910
    %1050 = vmatpush1.bf16.msra.mxu0 %v909
    %1051 = vmatprep.subr.bf16.mxu0 %v912
    %1052 = vmatpush1.bf16.msra.mxu0 %v911
    %1053 = vmatprep.subr.bf16.mxu0 %v914
    %1054 = vmatpush1.bf16.msra.mxu0 %v913
    %1055 = vmatprep.subr.bf16.mxu0 %v916
    %1056 = vmatpush1.bf16.msra.mxu0 %v915
    %1057 = vmatprep.subr.bf16.mxu0 %v918
    %1058 = vmatpush1.bf16.msra.mxu0 %v917
    %1059 = vmatprep.subr.bf16.mxu0 %v920
    %1060 = vmatpush1.bf16.msra.mxu0 %v919
    %1061 = vmatprep.subr.bf16.mxu0 %v922
    %1062 = vmatpush1.bf16.msra.mxu0 %v921
    %1063 = vmatprep.subr.bf16.mxu0 %v924
    %1064 = vmatpush1.bf16.msra.mxu0 %v923
    %1065 = vmatprep.subr.bf16.mxu0 %v926
    %1066 = vmatpush1.bf16.msra.mxu0 %v925
    %1067 = vmatprep.subr.bf16.mxu0 %v928
    %1068 = vmatpush1.bf16.msra.mxu0 %v927
    %1069 = vmatprep.subr.bf16.mxu0 %v930
    %1070 = vmatpush1.bf16.msra.mxu0 %v929
    %1071 = vmatprep.subr.bf16.mxu0 %v932
    %1072 = vmatpush1.bf16.msra.mxu0 %v931
    %1073 = vmatprep.subr.bf16.mxu0 %v934
    %1074 = vmatpush1.bf16.msra.mxu0 %v933
    %1075 = vmatprep.subr.bf16.mxu0 %v936
    %1076 = vmatpush1.bf16.msra.mxu0 %v935
    %1077 = vmatprep.mubr.bf16.mxu0 %v898
    %1078 = vmatmul.mubr.bf16.gmra.mrb[0].mxu0 %v897
    %v1079 = vpop.f32.mrb[0].mxu0
    %v1080 = vadd.f32 %v1038, %v1079
    %v1081 = vpop.f32.mrb[0].mxu0
    %v1082 = vadd.f32 %v1042, %v1081
    %v1083 = vpop.f32.mrb[0].mxu0
    %v1084 = vpop.f32.mrb[0].mxu0
    %1085 = vdwg.mxu0
    %1086 = vmatprep.subr.bf16.mxu0 %v938
    %1087 = vmatpush1.bf16.msra.mxu0 %v937
    %1088 = vmatprep.subr.bf16.mxu0 %v940
    %1089 = vmatpush1.bf16.msra.mxu0 %v939
    %1090 = vmatprep.subr.bf16.mxu0 %v942
    %1091 = vmatpush1.bf16.msra.mxu0 %v941
    %1092 = vmatprep.subr.bf16.mxu0 %v944
    %1093 = vmatpush1.bf16.msra.mxu0 %v943
    %1094 = vmatprep.subr.bf16.mxu0 %v946
    %1095 = vmatpush1.bf16.msra.mxu0 %v945
    %1096 = vmatprep.subr.bf16.mxu0 %v948
    %1097 = vmatpush1.bf16.msra.mxu0 %v947
    %1098 = vmatprep.subr.bf16.mxu0 %v950
    %1099 = vmatpush1.bf16.msra.mxu0 %v949
    %1100 = vmatprep.subr.bf16.mxu0 %v952
    %1101 = vmatpush1.bf16.msra.mxu0 %v951
    %1102 = vmatprep.subr.bf16.mxu0 %v954
    %1103 = vmatpush1.bf16.msra.mxu0 %v953
    %1104 = vmatprep.subr.bf16.mxu0 %v956
    %1105 = vmatpush1.bf16.msra.mxu0 %v955
    %1106 = vmatprep.subr.bf16.mxu0 %v958
    %1107 = vmatpush1.bf16.msra.mxu0 %v957
    %1108 = vmatprep.subr.bf16.mxu0 %v960
    %1109 = vmatpush1.bf16.msra.mxu0 %v959
    %1110 = vmatprep.subr.bf16.mxu0 %v962
    %1111 = vmatpush1.bf16.msra.mxu0 %v961
    %1112 = vmatprep.subr.bf16.mxu0 %v964
    %1113 = vmatpush1.bf16.msra.mxu0 %v963
    %1114 = vmatprep.subr.bf16.mxu0 %v966
    %1115 = vmatpush1.bf16.msra.mxu0 %v965
    %1116 = vmatprep.subr.bf16.mxu0 %v968
    %1117 = vmatpush1.bf16.msra.mxu0 %v967
    %1118 = vmatprep.mubr.bf16.mxu0 %v900
    %1119 = vmatmul.mubr.bf16.gmra.mrb[0].mxu0 %v899
    %v1120 = vpop.f32.mrb[0].mxu0
    %v1121 = vadd.f32 %v1080, %v1120
    %v1122 = vpop.f32.mrb[0].mxu0
    %v1123 = vadd.f32 %v1082, %v1122
    %v1124 = vpop.f32.mrb[0].mxu0
    %v1125 = vpop.f32.mrb[0].mxu0
    %1126 = vdwg.mxu0
    %1127 = vmatprep.subr.bf16.mxu0 %v970
    %1128 = vmatpush1.bf16.msra.mxu0 %v969
    %1129 = vmatprep.subr.bf16.mxu0 %v972
    %1130 = vmatpush1.bf16.msra.mxu0 %v971
    %1131 = vmatprep.subr.bf16.mxu0 %v974
    %1132 = vmatpush1.bf16.msra.mxu0 %v973
    %1133 = vmatprep.subr.bf16.mxu0 %v976
    %1134 = vmatpush1.bf16.msra.mxu0 %v975
    %1135 = vmatprep.subr.bf16.mxu0 %v978
    %1136 = vmatpush1.bf16.msra.mxu0 %v977
    %1137 = vmatprep.subr.bf16.mxu0 %v980
    %1138 = vmatpush1.bf16.msra.mxu0 %v979
    %1139 = vmatprep.subr.bf16.mxu0 %v982
    %1140 = vmatpush1.bf16.msra.mxu0 %v981
    %1141 = vmatprep.subr.bf16.mxu0 %v984
    %1142 = vmatpush1.bf16.msra.mxu0 %v983
    %1143 = vmatprep.subr.bf16.mxu0 %v986
    %1144 = vmatpush1.bf16.msra.mxu0 %v985
    %1145 = vmatprep.subr.bf16.mxu0 %v988
    %1146 = vmatpush1.bf16.msra.mxu0 %v987
    %1147 = vmatprep.subr.bf16.mxu0 %v990
    %1148 = vmatpush1.bf16.msra.mxu0 %v989
    %1149 = vmatprep.subr.bf16.mxu0 %v992
    %1150 = vmatpush1.bf16.msra.mxu0 %v991
    %1151 = vmatprep.subr.bf16.mxu0 %v994
    %1152 = vmatpush1.bf16.msra.mxu0 %v993
    %1153 = vmatprep.subr.bf16.mxu0 %v996
    %1154 = vmatpush1.bf16.msra.mxu0 %v995
    %1155 = vmatprep.subr.bf16.mxu0 %v998
    %1156 = vmatpush1.bf16.msra.mxu0 %v997
    %1157 = vmatprep.subr.bf16.mxu0 %v1000
    %1158 = vmatpush1.bf16.msra.mxu0 %v999
    %1159 = vmatprep.mubr.bf16.mxu0 %v902
    %1160 = vmatmul.mubr.bf16.gmra.mrb[0].mxu0 %v901
    %v1161 = vpop.f32.mrb[0].mxu0
    %v1162 = vadd.f32 %v1121, %v1161
    %v1163 = vpop.f32.mrb[0].mxu0
    %v1164 = vadd.f32 %v1123, %v1163
    %v1165 = vpop.f32.mrb[0].mxu0
    %v1166 = vpop.f32.mrb[0].mxu0
    %1167 = vdwg.mxu0
    %1168 = vmatprep.subr.bf16.mxu0 %v1002
    %1169 = vmatpush1.bf16.msra.mxu0 %v1001
    %1170 = vmatprep.subr.bf16.mxu0 %v1004
    %1171 = vmatpush1.bf16.msra.mxu0 %v1003
    %1172 = vmatprep.subr.bf16.mxu0 %v1006
    %1173 = vmatpush1.bf16.msra.mxu0 %v1005
    %1174 = vmatprep.subr.bf16.mxu0 %v1008
    %1175 = vmatpush1.bf16.msra.mxu0 %v1007
    %1176 = vmatprep.subr.bf16.mxu0 %v1010
    %1177 = vmatpush1.bf16.msra.mxu0 %v1009
    %1178 = vmatprep.subr.bf16.mxu0 %v1012
    %1179 = vmatpush1.bf16.msra.mxu0 %v1011
    %1180 = vmatprep.subr.bf16.mxu0 %v1014
    %1181 = vmatpush1.bf16.msra.mxu0 %v1013
    %1182 = vmatprep.subr.bf16.mxu0 %v1016
    %1183 = vmatpush1.bf16.msra.mxu0 %v1015
    %1184 = vmatprep.subr.bf16.mxu0 %v1018
    %1185 = vmatpush1.bf16.msra.mxu0 %v1017
    %1186 = vmatprep.subr.bf16.mxu0 %v1020
    %1187 = vmatpush1.bf16.msra.mxu0 %v1019
    %1188 = vmatprep.subr.bf16.mxu0 %v1022
    %1189 = vmatpush1.bf16.msra.mxu0 %v1021
    %1190 = vmatprep.subr.bf16.mxu0 %v1024
    %1191 = vmatpush1.bf16.msra.mxu0 %v1023
    %1192 = vmatprep.subr.bf16.mxu0 %v1026
    %1193 = vmatpush1.bf16.msra.mxu0 %v1025
    %1194 = vmatprep.subr.bf16.mxu0 %v1028
    %1195 = vmatpush1.bf16.msra.mxu0 %v1027
    %1196 = vmatprep.subr.bf16.mxu0 %v1030
    %1197 = vmatpush1.bf16.msra.mxu0 %v1029
    %1198 = vmatprep.subr.bf16.mxu0 %v1032
    %1199 = vmatpush1.bf16.msra.mxu0 %v1031
    %1200 = vmatprep.mubr.bf16.mxu0 %v904
    %1201 = vmatmul.mubr.bf16.gmra.mrb[0].mxu0 %v903
    %v1202 = vpop.f32.mrb[0].mxu0
    %v1203 = vadd.f32 %v1162, %v1202
    %v1204 = vpop.f32.mrb[0].mxu0
    %v1205 = vadd.f32 %v1164, %v1204
    %v1206 = vpop.f32.mrb[0].mxu0
    %v1207 = vpop.f32.mrb[0].mxu0
    %1208 = vdwg.mxu0
    %v1209 = vmin.f32 %v1203, 20.0
    %v1210 = vmin.f32 %v1205, 20.0
    %v1211 = vmul.f32 %v1209, 1.442695
    %v1212 = vpow.pop %v1211
    %v1213 = vmul.f32 %v1210, 1.442695
    %v1214 = vpow.pop %v1213
    %v1215 = vadd.f32 %v1212, 2.0
    %v1216 = vadd.f32 %v1214, 2.0
    %v1217 = vmul.f32 %v1212, %v1215
    %v1218 = vmul.f32 %v1214, %v1216
    %v1219 = vmul.f32 %v1203, %v1217
    %v1220 = vmul.f32 %v1205, %v1218
    %v1221 = vadd.f32 %v1217, 2.0
    %v1222 = vadd.f32 %v1218, 2.0
    %v1223 = vrcp.pop %v1221
    %v1224 = vrcp.pop %v1222
    %v1225 = vmul.f32 %v1219, %v1223
    %v1226 = vmul.f32 %v1220, %v1224
    %vm1227 = vcmp.gt.f32.partialorder %v1203, 20.0
    %vm1228 = vcmp.gt.f32.partialorder %v1205, 20.0
    %v1229 = vsel %vm1227, %v1203, %v1225
    %v1230 = vsel %vm1228, %v1205, %v1226
    %s1231 = smul.u32 4, 32
    %s1232 = smul.u32 %s1231, 1
    %s1233 = sshll.u32 %s1232, 4
    %1234 = dma.done %s109, %s1233
    %v1235 = vpack.c.bf16 %v1229, %v1229
    %v1236 = vpack.c.bf16 %v1230, %v1230
    %v1237 = vld [vmem:[#allocation4] sm:$0xff]
    %v1238 = vld [vmem:[#allocation4 + $0x8] sm:$0xff]
    %v1239 = vld [vmem:[#allocation4 + $0x10] sm:$0xff]
    %v1240 = vld [vmem:[#allocation4 + $0x18] sm:$0xff]
    %v1241 = vld [vmem:[#allocation4 + $0x20] sm:$0xff]
    %v1242 = vld [vmem:[#allocation4 + $0x28] sm:$0xff]
    %v1243 = vld [vmem:[#allocation4 + $0x30] sm:$0xff]
    %v1244 = vld [vmem:[#allocation4 + $0x38] sm:$0xff]
    %v1245 = vld [vmem:[#allocation4 + $0x40] sm:$0xff]
    %v1246 = vld [vmem:[#allocation4 + $0x48] sm:$0xff]
    %v1247 = vld [vmem:[#allocation4 + $0x50] sm:$0xff]
    %v1248 = vld [vmem:[#allocation4 + $0x58] sm:$0xff]
    %v1249 = vld [vmem:[#allocation4 + $0x60] sm:$0xff]
    %v1250 = vld [vmem:[#allocation4 + $0x68] sm:$0xff]
    %v1251 = vld [vmem:[#allocation4 + $0x70] sm:$0xff]
    %v1252 = vld [vmem:[#allocation4 + $0x78] sm:$0xff]
    %v1253 = vld [vmem:[%s5] sm:$0x1]
    %v1255 = vlaneseq
    %v1256 = vshrl.u32 %v1255, 7
    %v1257 = vsub.s32 0, %v1256
    %v1258 = vrot.slane %v1253, %v1257
    %1260 = vmatprep.subr.bf16.mxu0 0
    %1261 = vmatpush1.bf16.msra.mxu0 %v1237
    %1262 = vmatprep.subr.bf16.mxu0 0
    %1263 = vmatpush1.bf16.msra.mxu0 %v1238
    %1264 = vmatprep.subr.bf16.mxu0 0
    %1265 = vmatpush1.bf16.msra.mxu0 %v1239
    %1266 = vmatprep.subr.bf16.mxu0 0
    %1267 = vmatpush1.bf16.msra.mxu0 %v1240
    %1268 = vmatprep.subr.bf16.mxu0 0
    %1269 = vmatpush1.bf16.msra.mxu0 %v1241
    %1270 = vmatprep.subr.bf16.mxu0 0
    %1271 = vmatpush1.bf16.msra.mxu0 %v1242
    %1272 = vmatprep.subr.bf16.mxu0 0
    %1273 = vmatpush1.bf16.msra.mxu0 %v1243
    %1274 = vmatprep.subr.bf16.mxu0 0
    %1275 = vmatpush1.bf16.msra.mxu0 %v1244
    %1276 = vmatprep.subr.bf16.mxu0 0
    %1277 = vmatpush1.bf16.msra.mxu0 %v1245
    %1278 = vmatprep.subr.bf16.mxu0 0
    %1279 = vmatpush1.bf16.msra.mxu0 %v1246
    %1280 = vmatprep.subr.bf16.mxu0 0
    %1281 = vmatpush1.bf16.msra.mxu0 %v1247
    %1282 = vmatprep.subr.bf16.mxu0 0
    %1283 = vmatpush1.bf16.msra.mxu0 %v1248
    %1284 = vmatprep.subr.bf16.mxu0 0
    %1285 = vmatpush1.bf16.msra.mxu0 %v1249
    %1286 = vmatprep.subr.bf16.mxu0 0
    %1287 = vmatpush1.bf16.msra.mxu0 %v1250
    %1288 = vmatprep.subr.bf16.mxu0 0
    %1289 = vmatpush1.bf16.msra.mxu0 %v1251
    %1290 = vmatprep.subr.bf16.mxu0 0
    %1291 = vmatpush1.bf16.msra.mxu0 %v1252
    %1292 = vmatprep.mubr.bf16.mxu0 %v1236
    %1293 = vmatmul.mubr.bf16.gmra.mrb[0].mxu0 %v1235
    %v1294 = vpop.f32.mrb[0].mxu0
    %v1295 = vadd.f32 %v1258, %v1294
    %v1296 = vpop.f32.mrb[0].mxu0
    %v1297 = vpop.f32.mrb[0].mxu0
    %v1298 = vpop.f32.mrb[0].mxu0
    %1299 = vdwg.mxu0
    %1300 = vst [vmem:[%s9] sm:$0xff] %v1295
    // Predicated region
    $region64: #{bnet_forward.1} parent=1 // pred_check
      _
    $region65: #{bnet_forward.1} parent=1 // pred_check_branch
      %1302 = sbr.rel (0) target = $region67
    $region66: #{bnet_forward.1} parent=1 // pred_region
      _
    $region67: #{bnet_forward.1} parent=1 // pred_fallthru
      _
    // Predicated region
    $region68: #{bnet_forward.1} parent=1 // pred_check
      _
    $region69: #{bnet_forward.1} parent=1 // pred_check_branch
      %1304 = sbr.rel (0) target = $region71
    $region70: #{bnet_forward.1} parent=1 // pred_region
      _
    $region71: #{bnet_forward.1} parent=1 // pred_fallthru
      _
    %1305 = vsyncpa [#allocation7], 1
  %1306 = vsyncmov [#allocation5]
  %s1307 = vpop.sfrf %1306
  %p1308 = scmp.eq.s32.totalorder %s1307, 0
  %p1309 = pneg %p1308
  %1311 = shalt.err (%p1309)
  %s1312 = scalar_lea.sflag [#allocation5], 1
  %1313 = vsyncmov %s1312
  %s1314 = vpop.sfrf %1313
  %p1315 = scmp.eq.s32.totalorder %s1314, 0
  %p1316 = pneg %p1315
  %1318 = shalt.err (%p1316)
  %s1319 = scalar_lea.sflag [#allocation5], 2
  %1320 = vsyncmov %s1319
  %s1321 = vpop.sfrf %1320
  %p1322 = scmp.eq.s32.totalorder %s1321, 0
  %p1323 = pneg %p1322
  %1325 = shalt.err (%p1323)

</llo_original>
